<compile_context>
chip_gen: v5e
topology: v5e:2x2
jax: 0.10.0
libtpu: 0.0.40
codegen_flags: <defaults>
</compile_context>

<pallas_src>
import jax
import jax.numpy as jnp
from jax import lax
from jax.experimental import pallas as pl
from jax.experimental.pallas import tpu as pltpu

_LN_EPS = 1e-5


def _vmem_budget_bytes():
    """Per-generation scoped-VMEM budget (v5e/v6e: 128 MiB physical, v7x: 64 MiB/TC)."""
    try:
        info = pltpu.get_tpu_info()
        for name in ("vmem_capacity_bytes", "vmem_size_bytes", "vmem_bytes"):
            cap = getattr(info, name, None)
            if cap:
                return int(min(int(cap) // 2, 64 << 20))
    except Exception:
        pass
    return 32 << 20                      # conservative default, safe on every generation


def _pick_row_tile(batch, ho, wo, cin, cout, vmem_budget, target_pixels):
    """Output-row tile TH (divides Ho): big tiles amortize the ~0.35us/step pipeline
    overhead, capped by the per-generation VMEM budget and `target_pixels`."""
    # Approximate double-buffered VMEM bytes per output row of a tile:
    # 4 bf16 parity-phase blocks (~2*(Wo+1)+2*Wo input pixels / output row) + f32 output.
    per_row = 2 * ((2 * (wo + 1) + 2 * wo) * cin * 2 + wo * cout * 4)
    fixed = 4 * (9 * cin * cout * 2 + 3 * cout * 4) + (4 << 20)   # weights/vecs + slack
    budget_rows = max(1, (vmem_budget - fixed) // max(per_row, 1))
    max_rows = min(ho, budget_rows, max(1, target_pixels // max(wo, 1)))
    if batch == 1 and ho >= 2:
        # v7x has 2 TensorCores: keep >= 2 "parallel" grid steps when there is only 1 batch.
        max_rows = min(max_rows, max(1, ho // 2))
    best = None
    for d in range(1, ho + 1):
        if ho % d:
            continue
        if d > max_rows:
            break                         # divisors increase; nothing larger fits
        if d == ho or (d * wo) % 8 == 0:  # (8,128) rule for the (M, Cout) output block
            best = d
    if best is None:
        # No legal row tile: fall back to one tile per image (block == full array dims).
        # TODO(synk): masked tail tiles would lift this and the "TH divides Ho" restriction.
        best = ho
    return best


def _make_kernel(th, wo, cin, cout):
    """Conv(3x3, s=2, p=1) + channel-LayerNorm for one (batch, row-tile) block."""
    m = th * wo

    def kernel(ee_ref, eo_ref, oe_ref, oo_ref, w_ref,
               bias_ref, gamma_ref, beta_ref, o_ref):
        # Parity-phase refs (bf16):
        #   ee: even rows / even cols  (TH+1, Wo+1, Cin)   -- +1 halo row & col
        #   eo: even rows / odd  cols  (TH+1, Wo,   Cin)   -- +1 halo row
        #   oe: odd  rows / even cols  (TH,   Wo+1, Cin)   -- +1 halo col
        #   oo: odd  rows / odd  cols  (TH,   Wo,   Cin)
        # Tap k = kh*3 + kw  ->  (phase, row offset, col offset) inside that phase.
        taps = (
            (ee_ref, 0, 0), (eo_ref, 0, 0), (ee_ref, 0, 1),   # kh = 0
            (oe_ref, 0, 0), (oo_ref, 0, 0), (oe_ref, 0, 1),   # kh = 1
            (ee_ref, 1, 0), (eo_ref, 1, 0), (ee_ref, 1, 1),   # kh = 2
        )
        # VMEM im2col: (M, 9*Cin) bf16 -> ONE MXU dot instead of nine K=Cin dots.
        # TODO(synk): the dc=1 slices are sublane-unaligned; if the Mosaic dump shows
        # costly relayout copies, replace them with pltpu.roll (XLU) + aligned slices.
        cols = jnp.concatenate(
            [ref[dr:dr + th, dc:dc + wo, :].reshape(m, cin) for ref, dr, dc in taps],
            axis=-1)
        y = jnp.dot(cols, w_ref[...], preferred_element_type=jnp.float32)
        y = y + bias_ref[...]                                  # (M, Cout), f32

        # LayerNorm over channels (f32; channels are unpadded so no lane masks needed).
        inv_c = 1.0 / float(cout)
        mean = jnp.sum(y, axis=-1, keepdims=True) * inv_c
        var = jnp.sum(y * y, axis=-1, keepdims=True) * inv_c - mean * mean
        inv = lax.rsqrt(var + _LN_EPS)
        scale = gamma_ref[...] * inv                           # fused affine tail
        shift = beta_ref[...] - mean * scale
        o_ref[...] = (y * scale + shift).astype(o_ref.dtype)

    return kernel


def dass_downsample_nhwc(x_nhwc, conv_w, conv_b, ln_gamma, ln_beta,
                         out_dtype=None, target_pixels=4096):
    """Conv2d(k=3, s=2, p=1) + LayerNorm over channels.  NHWC in -> NHWC out."""
    B, H, W, Cin = x_nhwc.shape
    Cout = conv_w.shape[0]
    Ho, Wo = (H + 1) // 2, (W + 1) // 2
    out_dtype = x_nhwc.dtype if out_dtype is None else out_dtype

    vmem_budget = _vmem_budget_bytes()
    TH = _pick_row_tile(B, Ho, Wo, Cin, Cout, vmem_budget, target_pixels)
    n_t = Ho // TH
    M = TH * Wo

    # --- glue: bf16 cast + spatial pad + per-tile stride-2 parity slices.  Each phase
    # tile is a strided slice of `xp`, so cast+pad+slice fuse into one producer pass and
    # only the (slightly halo-duplicated) phase tiles are materialized in HBM.
    # TODO(synk): pulling the parity deinterleave inside the kernel (strided pl.ds on a
    # raw padded block, or pl.Element row windows) would drop even that single pass.
    xp = jnp.pad(x_nhwc.astype(jnp.bfloat16), ((0, 0), (1, 1), (1, 1), (0, 0)))

    def phase_tiles(rpar, cpar, rows, cols):
        tiles = []
        for t in range(n_t):
            r0 = 2 * t * TH + rpar
            tiles.append(xp[:, r0:r0 + 2 * rows - 1:2, cpar:cpar + 2 * cols - 1:2, :])
        return jnp.stack(tiles, axis=1)            # (B, n_t, rows, cols, Cin)

    ee_t = phase_tiles(0, 0, TH + 1, Wo + 1)       # even rows / even cols (+halo row & col)
    eo_t = phase_tiles(0, 1, TH + 1, Wo)           # even rows / odd  cols (+halo row)
    oe_t = phase_tiles(1, 0, TH, Wo + 1)           # odd  rows / even cols (+halo col)
    oo_t = phase_tiles(1, 1, TH, Wo)               # odd  rows / odd  cols

    # Conv weight (Cout, Cin, 3, 3) -> (9*Cin, Cout) bf16 in (kh, kw, ci) order, matching
    # the in-kernel tap concatenation.  Bias / LN params stay f32.
    w = jnp.transpose(conv_w, (2, 3, 1, 0)).reshape(9 * Cin, Cout).astype(jnp.bfloat16)
    bias = conv_b.astype(jnp.float32).reshape(1, Cout)
    gamma = ln_gamma.astype(jnp.float32).reshape(1, Cout)
    beta = ln_beta.astype(jnp.float32).reshape(1, Cout)

    kernel = _make_kernel(TH, Wo, Cin, Cout)
    phase_idx = lambda b, t: (b, t, 0, 0, 0)
    const2 = lambda b, t: (0, 0)

    out = pl.pallas_call(
        kernel,
        out_shape=jax.ShapeDtypeStruct((B, Ho * Wo, Cout), out_dtype),
        grid=(B, n_t),
        in_specs=[
            pl.BlockSpec((None, None, TH + 1, Wo + 1, Cin), phase_idx),
            pl.BlockSpec((None, None, TH + 1, Wo, Cin), phase_idx),
            pl.BlockSpec((None, None, TH, Wo + 1, Cin), phase_idx),
            pl.BlockSpec((None, None, TH, Wo, Cin), phase_idx),
            pl.BlockSpec((9 * Cin, Cout), const2),
            pl.BlockSpec((1, Cout), const2),
            pl.BlockSpec((1, Cout), const2),
            pl.BlockSpec((1, Cout), const2),
        ],
        out_specs=pl.BlockSpec((None, M, Cout), lambda b, t: (b, t, 0)),
        compiler_params=pltpu.CompilerParams(
            dimension_semantics=("parallel", "parallel"),
            vmem_limit_bytes=vmem_budget,
        ),
    )(ee_t, eo_t, oe_t, oo_t, w, bias, gamma, beta)

    return out.reshape(B, Ho, Wo, Cout)


def dass_downsample(x_nchw, conv_w, conv_b, ln_gamma, ln_beta, target_pixels=4096):
    """NCHW wrapper matching the PyTorch `DASSDowsample` interface.

    TODO(synk): if the surrounding model keeps NHWC activations, call
    dass_downsample_nhwc directly and skip both layout transposes (pure HBM passes).
    """
    x = jnp.transpose(x_nchw, (0, 2, 3, 1))
    y = dass_downsample_nhwc(x, conv_w, conv_b, ln_gamma, ln_beta,
                             out_dtype=x_nchw.dtype, target_pixels=target_pixels)
    return jnp.transpose(y, (0, 3, 1, 2))


def _reference(x_nchw, conv_w, conv_b, ln_gamma, ln_beta):
    """Pure-JAX f32 reference (conv_general_dilated + LayerNorm) for verification."""
    x = jnp.transpose(x_nchw, (0, 2, 3, 1)).astype(jnp.float32)          # NHWC
    w_hwio = jnp.transpose(conv_w, (2, 3, 1, 0)).astype(jnp.float32)     # HWIO
    y = lax.conv_general_dilated(
        x, w_hwio, window_strides=(2, 2), padding=((1, 1), (1, 1)),
        dimension_numbers=("NHWC", "HWIO", "NHWC"))
    y = y + conv_b.reshape(1, 1, 1, -1)
    mean = jnp.mean(y, axis=-1, keepdims=True)
    var = jnp.mean((y - mean) ** 2, axis=-1, keepdims=True)
    y = (y - mean) * lax.rsqrt(var + _LN_EPS)
    y = y * ln_gamma.reshape(1, 1, 1, -1) + ln_beta.reshape(1, 1, 1, -1)
    return jnp.transpose(y, (0, 3, 1, 2))                                # NCHW


if __name__ == "__main__":
    def make_case(key, B, Cin, H, W, Cout):
        k_x, k_w, k_b, k_g, k_be = jax.random.split(key, 5)
        x = jax.random.normal(k_x, (B, Cin, H, W), jnp.float32)
        bound = 1.0 / ((Cin * 9) ** 0.5)
        conv_w = jax.random.uniform(k_w, (Cout, Cin, 3, 3), jnp.float32, -bound, bound)
        conv_b = jax.random.uniform(k_b, (Cout,), jnp.float32, -bound, bound)
        ln_gamma = jax.random.uniform(k_g, (Cout,), jnp.float32, 0.5, 1.5)
        ln_beta = 0.1 * jax.random.normal(k_be, (Cout,), jnp.float32)
        return x, conv_w, conv_b, ln_gamma, ln_beta

    key = jax.random.PRNGKey(0)
    k1, k2 = jax.random.split(key)

    # Case 1: module-sized example (single row tile per image, fully lane-legal blocks).
    args1 = make_case(k1, B=2, Cin=4, H=16, W=16, Cout=8)
    out1 = jax.block_until_ready(jax.jit(dass_downsample)(*args1))
    ref1 = _reference(*args1)
    assert out1.shape == (2, 8, 8, 8), out1.shape
    err1 = float(jnp.max(jnp.abs(out1 - ref1)))
    assert jnp.allclose(out1, ref1, atol=3e-2, rtol=3e-2), err1

    # Case 2: B=1 with a small target_pixels to exercise row tiling (halo rows and a
    # multi-step "parallel" grid so v7x's two TensorCores both get work).
    args2 = make_case(k2, B=1, Cin=8, H=32, W=32, Cout=16)
    fn2 = jax.jit(lambda *a: dass_downsample(*a, target_pixels=32))
    out2 = jax.block_until_ready(fn2(*args2))
    ref2 = _reference(*args2)
    assert out2.shape == (1, 16, 16, 16), out2.shape
    err2 = float(jnp.max(jnp.abs(out2 - ref2)))
    assert jnp.allclose(out2, ref2, atol=3e-2, rtol=3e-2), err2

    print("KERNEL_OK")
</pallas_src>

<mosaic_0001>
module attributes {stable_mosaic.version = 11 : i64} {
  func.func @kernel(%arg0: i32, %arg1: i32, %arg2: memref<1x1x9x9x4xbf16, #tpu.memory_space<vmem>>, %arg3: memref<1x1x9x8x4xbf16, #tpu.memory_space<vmem>>, %arg4: memref<1x1x8x9x4xbf16, #tpu.memory_space<vmem>>, %arg5: memref<1x1x8x8x4xbf16, #tpu.memory_space<vmem>>, %arg6: memref<36x8xbf16, #tpu.memory_space<vmem>>, %arg7: memref<1x8xf32, #tpu.memory_space<vmem>>, %arg8: memref<1x8xf32, #tpu.memory_space<vmem>>, %arg9: memref<1x8xf32, #tpu.memory_space<vmem>>, %arg10: memref<1x64x8xf32, #tpu.memory_space<vmem>>) attributes {dimension_semantics = [#tpu.dimension_semantics<parallel>, #tpu.dimension_semantics<parallel>], iteration_bounds = array<i64: 2, 1>, scalar_prefetch = 0 : i64, scratch_operands = 0 : i64, tpu.core_type = #tpu.core_type<tc>, window_params = [{transform_indices = @transform_0, window_bounds = array<i64: 1, 1, 9, 9, 4>}, {transform_indices = @transform_1, window_bounds = array<i64: 1, 1, 9, 8, 4>}, {transform_indices = @transform_2, window_bounds = array<i64: 1, 1, 8, 9, 4>}, {transform_indices = @transform_3, window_bounds = array<i64: 1, 1, 8, 8, 4>}, {pipeline_mode = #tpu.pipeline_mode<synchronous>, transform_indices = @transform_4, window_bounds = array<i64: 36, 8>}, {pipeline_mode = #tpu.pipeline_mode<synchronous>, transform_indices = @transform_5, window_bounds = array<i64: 1, 8>}, {pipeline_mode = #tpu.pipeline_mode<synchronous>, transform_indices = @transform_6, window_bounds = array<i64: 1, 8>}, {pipeline_mode = #tpu.pipeline_mode<synchronous>, transform_indices = @transform_7, window_bounds = array<i64: 1, 8>}, {transform_indices = @transform_8, window_bounds = array<i64: 1, 64, 8>}]} {
    %c0 = arith.constant 0 : index
    %c0_0 = arith.constant 0 : index
    %c0_1 = arith.constant 0 : index
    %c0_2 = arith.constant 0 : index
    %c0_3 = arith.constant 0 : index
    %0 = vector.load %arg2[%c0, %c0_0, %c0_1, %c0_2, %c0_3] : memref<1x1x9x9x4xbf16, #tpu.memory_space<vmem>>, vector<1x1x8x8x4xbf16>
    %1 = vector.shape_cast %0 : vector<1x1x8x8x4xbf16> to vector<8x8x4xbf16>
    %2 = vector.shape_cast %1 : vector<8x8x4xbf16> to vector<64x4xbf16>
    %c0_4 = arith.constant 0 : index
    %c0_5 = arith.constant 0 : index
    %c0_6 = arith.constant 0 : index
    %c0_7 = arith.constant 0 : index
    %c0_8 = arith.constant 0 : index
    %3 = vector.load %arg3[%c0_4, %c0_5, %c0_6, %c0_7, %c0_8] : memref<1x1x9x8x4xbf16, #tpu.memory_space<vmem>>, vector<1x1x8x8x4xbf16>
    %4 = vector.shape_cast %3 : vector<1x1x8x8x4xbf16> to vector<8x8x4xbf16>
    %5 = vector.shape_cast %4 : vector<8x8x4xbf16> to vector<64x4xbf16>
    %c0_9 = arith.constant 0 : index
    %c0_10 = arith.constant 0 : index
    %c0_11 = arith.constant 0 : index
    %c1 = arith.constant 1 : index
    %c0_12 = arith.constant 0 : index
    %6 = vector.load %arg2[%c0_9, %c0_10, %c0_11, %c1, %c0_12] : memref<1x1x9x9x4xbf16, #tpu.memory_space<vmem>>, vector<1x1x8x8x4xbf16>
    %7 = vector.shape_cast %6 : vector<1x1x8x8x4xbf16> to vector<8x8x4xbf16>
    %8 = vector.shape_cast %7 : vector<8x8x4xbf16> to vector<64x4xbf16>
    %c0_13 = arith.constant 0 : index
    %c0_14 = arith.constant 0 : index
    %c0_15 = arith.constant 0 : index
    %c0_16 = arith.constant 0 : index
    %c0_17 = arith.constant 0 : index
    %9 = vector.load %arg4[%c0_13, %c0_14, %c0_15, %c0_16, %c0_17] : memref<1x1x8x9x4xbf16, #tpu.memory_space<vmem>>, vector<1x1x8x8x4xbf16>
    %10 = vector.shape_cast %9 : vector<1x1x8x8x4xbf16> to vector<8x8x4xbf16>
    %11 = vector.shape_cast %10 : vector<8x8x4xbf16> to vector<64x4xbf16>
    %c0_18 = arith.constant 0 : index
    %c0_19 = arith.constant 0 : index
    %c0_20 = arith.constant 0 : index
    %c0_21 = arith.constant 0 : index
    %c0_22 = arith.constant 0 : index
    %12 = vector.load %arg5[%c0_18, %c0_19, %c0_20, %c0_21, %c0_22] : memref<1x1x8x8x4xbf16, #tpu.memory_space<vmem>>, vector<1x1x8x8x4xbf16>
    %13 = vector.shape_cast %12 : vector<1x1x8x8x4xbf16> to vector<8x8x4xbf16>
    %14 = vector.shape_cast %13 : vector<8x8x4xbf16> to vector<64x4xbf16>
    %c0_23 = arith.constant 0 : index
    %c0_24 = arith.constant 0 : index
    %c0_25 = arith.constant 0 : index
    %c1_26 = arith.constant 1 : index
    %c0_27 = arith.constant 0 : index
    %15 = vector.load %arg4[%c0_23, %c0_24, %c0_25, %c1_26, %c0_27] : memref<1x1x8x9x4xbf16, #tpu.memory_space<vmem>>, vector<1x1x8x8x4xbf16>
    %16 = vector.shape_cast %15 : vector<1x1x8x8x4xbf16> to vector<8x8x4xbf16>
    %17 = vector.shape_cast %16 : vector<8x8x4xbf16> to vector<64x4xbf16>
    %c0_28 = arith.constant 0 : index
    %c0_29 = arith.constant 0 : index
    %c1_30 = arith.constant 1 : index
    %c0_31 = arith.constant 0 : index
    %c0_32 = arith.constant 0 : index
    %18 = vector.load %arg2[%c0_28, %c0_29, %c1_30, %c0_31, %c0_32] : memref<1x1x9x9x4xbf16, #tpu.memory_space<vmem>>, vector<1x1x8x8x4xbf16>
    %19 = vector.shape_cast %18 : vector<1x1x8x8x4xbf16> to vector<8x8x4xbf16>
    %20 = vector.shape_cast %19 : vector<8x8x4xbf16> to vector<64x4xbf16>
    %c0_33 = arith.constant 0 : index
    %c0_34 = arith.constant 0 : index
    %c1_35 = arith.constant 1 : index
    %c0_36 = arith.constant 0 : index
    %c0_37 = arith.constant 0 : index
    %21 = vector.load %arg3[%c0_33, %c0_34, %c1_35, %c0_36, %c0_37] : memref<1x1x9x8x4xbf16, #tpu.memory_space<vmem>>, vector<1x1x8x8x4xbf16>
    %22 = vector.shape_cast %21 : vector<1x1x8x8x4xbf16> to vector<8x8x4xbf16>
    %23 = vector.shape_cast %22 : vector<8x8x4xbf16> to vector<64x4xbf16>
    %c0_38 = arith.constant 0 : index
    %c0_39 = arith.constant 0 : index
    %c1_40 = arith.constant 1 : index
    %c1_41 = arith.constant 1 : index
    %c0_42 = arith.constant 0 : index
    %24 = vector.load %arg2[%c0_38, %c0_39, %c1_40, %c1_41, %c0_42] : memref<1x1x9x9x4xbf16, #tpu.memory_space<vmem>>, vector<1x1x8x8x4xbf16>
    %25 = vector.shape_cast %24 : vector<1x1x8x8x4xbf16> to vector<8x8x4xbf16>
    %26 = vector.shape_cast %25 : vector<8x8x4xbf16> to vector<64x4xbf16>
    %27 = tpu.concatenate %2, %5, %8, %11, %14, %17, %20, %23, %26 in 1 : vector<64x4xbf16>, vector<64x4xbf16>, vector<64x4xbf16>, vector<64x4xbf16>, vector<64x4xbf16>, vector<64x4xbf16>, vector<64x4xbf16>, vector<64x4xbf16>, vector<64x4xbf16> -> vector<64x36xbf16>
    %c0_43 = arith.constant 0 : index
    %c0_44 = arith.constant 0 : index
    %28 = vector.load %arg6[%c0_43, %c0_44] : memref<36x8xbf16, #tpu.memory_space<vmem>>, vector<36x8xbf16>
    %cst = arith.constant dense<0.000000e+00> : vector<64x8xf32>
    %29 = tpu.matmul %27, %28, %cst {dimension_numbers = #tpu.dot_dimension_numbers<[1], [0], [0], [1], [0, 0, 1, 1], [], []>} : vector<64x36xbf16>, vector<36x8xbf16>, vector<64x8xf32> -> vector<64x8xf32>
    %c0_45 = arith.constant 0 : index
    %c0_46 = arith.constant 0 : index
    %30 = vector.load %arg7[%c0_45, %c0_46] : memref<1x8xf32, #tpu.memory_space<vmem>>, vector<1x8xf32>
    %31 = vector.broadcast %30 : vector<1x8xf32> to vector<64x8xf32>
    %32 = arith.addf %29, %31 : vector<64x8xf32>
    %cst_47 = arith.constant dense<0.000000e+00> : vector<64xf32>
    %33 = vector.multi_reduction <add>, %32, %cst_47 [1] : vector<64x8xf32> to vector<64xf32>
    %34 = vector.shape_cast %33 : vector<64xf32> to vector<64x1xf32>
    %cst_48 = arith.constant 1.250000e-01 : f32
    %35 = vector.broadcast %cst_48 : f32 to vector<64x1xf32>
    %36 = arith.mulf %34, %35 : vector<64x1xf32>
    %37 = arith.mulf %32, %32 : vector<64x8xf32>
    %cst_49 = arith.constant dense<0.000000e+00> : vector<64xf32>
    %38 = vector.multi_reduction <add>, %37, %cst_49 [1] : vector<64x8xf32> to vector<64xf32>
    %39 = vector.shape_cast %38 : vector<64xf32> to vector<64x1xf32>
    %cst_50 = arith.constant 1.250000e-01 : f32
    %40 = vector.broadcast %cst_50 : f32 to vector<64x1xf32>
    %41 = arith.mulf %39, %40 : vector<64x1xf32>
    %42 = arith.mulf %36, %36 : vector<64x1xf32>
    %43 = arith.subf %41, %42 : vector<64x1xf32>
    %cst_51 = arith.constant 9.99999974E-6 : f32
    %44 = vector.broadcast %cst_51 : f32 to vector<64x1xf32>
    %45 = arith.addf %43, %44 : vector<64x1xf32>
    %46 = math.rsqrt %45 : vector<64x1xf32>
    %c0_52 = arith.constant 0 : index
    %c0_53 = arith.constant 0 : index
    %47 = vector.load %arg8[%c0_52, %c0_53] : memref<1x8xf32, #tpu.memory_space<vmem>>, vector<1x8xf32>
    %48 = vector.broadcast %47 : vector<1x8xf32> to vector<64x8xf32>
    %49 = vector.broadcast %46 : vector<64x1xf32> to vector<64x8xf32>
    %50 = arith.mulf %48, %49 : vector<64x8xf32>
    %c0_54 = arith.constant 0 : index
    %c0_55 = arith.constant 0 : index
    %51 = vector.load %arg9[%c0_54, %c0_55] : memref<1x8xf32, #tpu.memory_space<vmem>>, vector<1x8xf32>
    %52 = vector.broadcast %36 : vector<64x1xf32> to vector<64x8xf32>
    %53 = arith.mulf %52, %50 : vector<64x8xf32>
    %54 = vector.broadcast %51 : vector<1x8xf32> to vector<64x8xf32>
    %55 = arith.subf %54, %53 : vector<64x8xf32>
    %56 = arith.mulf %32, %50 : vector<64x8xf32>
    %57 = arith.addf %56, %55 : vector<64x8xf32>
    %c0_56 = arith.constant 0 : index
    %c0_57 = arith.constant 0 : index
    %c0_58 = arith.constant 0 : index
    %58 = vector.load %arg10[%c0_56, %c0_57, %c0_58] : memref<1x64x8xf32, #tpu.memory_space<vmem>>, vector<1x64x8xf32>
    %59 = vector.shape_cast %58 : vector<1x64x8xf32> to vector<64x8xf32>
    %60 = vector.shape_cast %57 : vector<64x8xf32> to vector<1x64x8xf32>
    tpu.vector_store %arg10[%c0_56, %c0_57, %c0_58], %60 {strides = array<i32>} : memref<1x64x8xf32, #tpu.memory_space<vmem>>, vector<1x64x8xf32>,
    return
  }
  func.func @transform_0(%arg0: i32, %arg1: i32) -> (i32, i32, i32, i32, i32) {
    %c0_i32 = arith.constant 0 : i32
    %c0_i32_0 = arith.constant 0 : i32
    %c0_i32_1 = arith.constant 0 : i32
    %c0_i32_2 = arith.constant 0 : i32
    return %arg0, %arg1, %c0_i32, %c0_i32_0, %c0_i32_1 : i32, i32, i32, i32, i32
  }
  func.func @transform_1(%arg0: i32, %arg1: i32) -> (i32, i32, i32, i32, i32) {
    %c0_i32 = arith.constant 0 : i32
    %c0_i32_0 = arith.constant 0 : i32
    %c0_i32_1 = arith.constant 0 : i32
    %c0_i32_2 = arith.constant 0 : i32
    return %arg0, %arg1, %c0_i32, %c0_i32_0, %c0_i32_1 : i32, i32, i32, i32, i32
  }
  func.func @transform_2(%arg0: i32, %arg1: i32) -> (i32, i32, i32, i32, i32) {
    %c0_i32 = arith.constant 0 : i32
    %c0_i32_0 = arith.constant 0 : i32
    %c0_i32_1 = arith.constant 0 : i32
    %c0_i32_2 = arith.constant 0 : i32
    return %arg0, %arg1, %c0_i32, %c0_i32_0, %c0_i32_1 : i32, i32, i32, i32, i32
  }
  func.func @transform_3(%arg0: i32, %arg1: i32) -> (i32, i32, i32, i32, i32) {
    %c0_i32 = arith.constant 0 : i32
    %c0_i32_0 = arith.constant 0 : i32
    %c0_i32_1 = arith.constant 0 : i32
    %c0_i32_2 = arith.constant 0 : i32
    return %arg0, %arg1, %c0_i32, %c0_i32_0, %c0_i32_1 : i32, i32, i32, i32, i32
  }
  func.func @transform_4(%arg0: i32, %arg1: i32) -> (i32, i32) {
    %c0_i32 = arith.constant 0 : i32
    %c0_i32_0 = arith.constant 0 : i32
    %c0_i32_1 = arith.constant 0 : i32
    return %c0_i32, %c0_i32_0 : i32, i32
  }
  func.func @transform_5(%arg0: i32, %arg1: i32) -> (i32, i32) {
    %c0_i32 = arith.constant 0 : i32
    %c0_i32_0 = arith.constant 0 : i32
    %c0_i32_1 = arith.constant 0 : i32
    return %c0_i32, %c0_i32_0 : i32, i32
  }
  func.func @transform_6(%arg0: i32, %arg1: i32) -> (i32, i32) {
    %c0_i32 = arith.constant 0 : i32
    %c0_i32_0 = arith.constant 0 : i32
    %c0_i32_1 = arith.constant 0 : i32
    return %c0_i32, %c0_i32_0 : i32, i32
  }
  func.func @transform_7(%arg0: i32, %arg1: i32) -> (i32, i32) {
    %c0_i32 = arith.constant 0 : i32
    %c0_i32_0 = arith.constant 0 : i32
    %c0_i32_1 = arith.constant 0 : i32
    return %c0_i32, %c0_i32_0 : i32, i32
  }
  func.func @transform_8(%arg0: i32, %arg1: i32) -> (i32, i32, i32) {
    %c0_i32 = arith.constant 0 : i32
    %c0_i32_0 = arith.constant 0 : i32
    return %arg0, %arg1, %c0_i32 : i32, i32, i32
  }
}

</mosaic_0001>

<llo_original>
// kernel: dass_downsample.1
$region0: #{dass_downsample.1}
  #allocation0 [shape = 'u32[]', space=smem, size = 0x4, offset = 0x4, fixed_abs, tag = 'smem constant byte address 0x4 - core index']
  #allocation1 [shape = 'u32[72,128]{1,0:T(1,128)}', space=vmem, size = 0x9000, scoped, tag = 'internal scratch']
  %s0 = inlined_call_operand.vmem [shape: bf16[2,1,9,9,4], index: 0, kind: input, shape index: {}]
  %s1 = inlined_call_operand.vmem [shape: bf16[2,1,9,8,4], index: 1, kind: input, shape index: {}]
  %s2 = inlined_call_operand.vmem [shape: bf16[2,1,8,9,4], index: 2, kind: input, shape index: {}]
  %s3 = inlined_call_operand.vmem [shape: bf16[2,1,8,8,4], index: 3, kind: input, shape index: {}]
  %s4 = inlined_call_operand.vmem [shape: bf16[36,8], index: 4, kind: input, shape index: {}]
  %s5 = inlined_call_operand.vmem [shape: f32[1,8], index: 5, kind: input, shape index: {}]
  %s6 = inlined_call_operand.vmem [shape: f32[1,8], index: 6, kind: input, shape index: {}]
  %s7 = inlined_call_operand.vmem [shape: f32[1,8], index: 7, kind: input, shape index: {}]
  %s8 = inlined_call_operand.vmem [shape: f32[2,64,8], index: 8, kind: output, shape index: {}]
  %s9 = sld [smem:[#allocation0]]
  $region65: #{dass_downsample.1} parent=0
    _
  %s11 = ssub.s32 1, %s9
  %s12 = scalar_select 0, %s11, %s9
  loop: start=0, step=1, limit=4
  $region2: #{dass_downsample.1} parent=0 // loop_pre_header
    _
  $region3: #{dass_downsample.1} parent=0 // loop_header
    %s14 = sphi 0, %s18
    %p15 = scmp.ge.s32.totalorder %s14, 4
    %s21 = sphi 0, %s33
    %s22 = sphi 0, %s29
    %s23 = sphi 0, %s21
    %s24 = sphi 0, %s22
    %s25 = sphi 0, %s23
    %s26 = sphi 0, %s24
    %s38 = sphi 0, %s40
    %s41 = sphi 0, %s38
    %s42 = sphi 0, %s41
    %s58 = sphi 0, %s42
    %s66 = sphi 0, %s68
    %s69 = sphi 0, %s66
    %s70 = sphi 0, %s69
    %s86 = sphi 0, %s70
    %s94 = sphi 0, %s96
    %s97 = sphi 0, %s94
    %s98 = sphi 0, %s97
    %s114 = sphi 0, %s98
    %s122 = sphi 0, %s124
    %s125 = sphi 0, %s122
    %s126 = sphi 0, %s125
    %s142 = sphi 0, %s126
    %s146 = sphi 0, %s146
    %s148 = sphi 0, %s146
    %s149 = sphi 0, %s148
    %s163 = sphi 0, %s149
    %s167 = sphi 0, %s167
    %s169 = sphi 0, %s167
    %s170 = sphi 0, %s169
    %s184 = sphi 0, %s170
    %s188 = sphi 0, %s188
    %s190 = sphi 0, %s188
    %s191 = sphi 0, %s190
    %s205 = sphi 0, %s191
    %s209 = sphi 0, %s209
    %s211 = sphi 0, %s209
    %s212 = sphi 0, %s211
    %s226 = sphi 0, %s212
    %s234 = sphi 0, %s236
    %s237 = sphi 0, %s234
    %s238 = sphi 0, %s237
    %s254 = sphi 0, %s238
  $region4: #{dass_downsample.1} parent=0 // loop_header_branch
    %17 = sbr.rel (%p15) target = $region8
  $region5: #{dass_downsample.1} parent=0 // loop_body
    %s19 = ssub.s32 %s14, 1
    %s20 = ssub.s32 %s14, 2
    %s27 = sadd.s32 1, %s22
    %p28 = scmp.ge.s32.totalorder %s27, 1
    %s29 = scalar_select %p28, 0, %s27
    %s30 = sadd.s32 1, %s21
    %s31 = scalar_select %p28, %s30, %s21
    %p32 = scmp.ge.s32.totalorder %s31, 2
    %s33 = scalar_select %p32, 0, %s31
    %s34 = ssub.s32 %s21, %s33
    %s35 = ssub.s32 %s22, %s29
    %s36 = sor.u32 %s34, %s35
    %p37 = scmp.eq.s32.totalorder %s36, 0
    %s39 = sadd.s32 %s38, 1
    %s40 = scalar_select %p37, %s38, %s39
    %p43 = pneg %p37
    %p44 = scmp.eq.s32.totalorder %s14, 1
    %p45 = por %p43, %p44
    %p46 = scmp.ne.s32.totalorder %s38, %s41
    %p47 = scmp.eq.s32.totalorder %s14, 0
    %p48 = por %p46, %p47
    %p49 = scmp.ne.s32.totalorder %s38, %s41
    %p50 = scmp.eq.s32.totalorder %s19, 1
    %p51 = por %p49, %p50
    %p52 = scmp.ne.s32.totalorder %s41, %s42
    %p53 = scmp.eq.s32.totalorder %s19, 0
    %p54 = por %p52, %p53
    %p55 = scmp.ne.s32.totalorder %s41, %s42
    %p56 = scmp.eq.s32.totalorder %s20, 1
    %p57 = por %p55, %p56
    %p59 = scmp.ne.s32.totalorder %s42, %s58
    %p60 = scmp.eq.s32.totalorder %s20, 0
    %p61 = por %p59, %p60
    %s62 = ssub.s32 %s21, %s33
    %s63 = ssub.s32 %s22, %s29
    %s64 = sor.u32 %s62, %s63
    %p65 = scmp.eq.s32.totalorder %s64, 0
    %s67 = sadd.s32 %s66, 1
    %s68 = scalar_select %p65, %s66, %s67
    %p71 = pneg %p65
    %p72 = scmp.eq.s32.totalorder %s14, 1
    %p73 = por %p71, %p72
    %p74 = scmp.ne.s32.totalorder %s66, %s69
    %p75 = scmp.eq.s32.totalorder %s14, 0
    %p76 = por %p74, %p75
    %p77 = scmp.ne.s32.totalorder %s66, %s69
    %p78 = scmp.eq.s32.totalorder %s19, 1
    %p79 = por %p77, %p78
    %p80 = scmp.ne.s32.totalorder %s69, %s70
    %p81 = scmp.eq.s32.totalorder %s19, 0
    %p82 = por %p80, %p81
    %p83 = scmp.ne.s32.totalorder %s69, %s70
    %p84 = scmp.eq.s32.totalorder %s20, 1
    %p85 = por %p83, %p84
    %p87 = scmp.ne.s32.totalorder %s70, %s86
    %p88 = scmp.eq.s32.totalorder %s20, 0
    %p89 = por %p87, %p88
    %s90 = ssub.s32 %s21, %s33
    %s91 = ssub.s32 %s22, %s29
    %s92 = sor.u32 %s90, %s91
    %p93 = scmp.eq.s32.totalorder %s92, 0
    %s95 = sadd.s32 %s94, 1
    %s96 = scalar_select %p93, %s94, %s95
    %p99 = pneg %p93
    %p100 = scmp.eq.s32.totalorder %s14, 1
    %p101 = por %p99, %p100
    %p102 = scmp.ne.s32.totalorder %s94, %s97
    %p103 = scmp.eq.s32.totalorder %s14, 0
    %p104 = por %p102, %p103
    %p105 = scmp.ne.s32.totalorder %s94, %s97
    %p106 = scmp.eq.s32.totalorder %s19, 1
    %p107 = por %p105, %p106
    %p108 = scmp.ne.s32.totalorder %s97, %s98
    %p109 = scmp.eq.s32.totalorder %s19, 0
    %p110 = por %p108, %p109
    %p111 = scmp.ne.s32.totalorder %s97, %s98
    %p112 = scmp.eq.s32.totalorder %s20, 1
    %p113 = por %p111, %p112
    %p115 = scmp.ne.s32.totalorder %s98, %s114
    %p116 = scmp.eq.s32.totalorder %s20, 0
    %p117 = por %p115, %p116
    %s118 = ssub.s32 %s21, %s33
    %s119 = ssub.s32 %s22, %s29
    %s120 = sor.u32 %s118, %s119
    %p121 = scmp.eq.s32.totalorder %s120, 0
    %s123 = sadd.s32 %s122, 1
    %s124 = scalar_select %p121, %s122, %s123
    %p127 = pneg %p121
    %p128 = scmp.eq.s32.totalorder %s14, 1
    %p129 = por %p127, %p128
    %p130 = scmp.ne.s32.totalorder %s122, %s125
    %p131 = scmp.eq.s32.totalorder %s14, 0
    %p132 = por %p130, %p131
    %p133 = scmp.ne.s32.totalorder %s122, %s125
    %p134 = scmp.eq.s32.totalorder %s19, 1
    %p135 = por %p133, %p134
    %p136 = scmp.ne.s32.totalorder %s125, %s126
    %p137 = scmp.eq.s32.totalorder %s19, 0
    %p138 = por %p136, %p137
    %p139 = scmp.ne.s32.totalorder %s125, %s126
    %p140 = scmp.eq.s32.totalorder %s20, 1
    %p141 = por %p139, %p140
    %p143 = scmp.ne.s32.totalorder %s126, %s142
    %p144 = scmp.eq.s32.totalorder %s20, 0
    %p145 = por %p143, %p144
    %s147 = sadd.s32 %s146, 1
    %p150 = scmp.eq.s32.totalorder %s14, 1
    %p151 = scmp.ne.s32.totalorder %s146, %s148
    %p152 = scmp.eq.s32.totalorder %s14, 0
    %p153 = por %p151, %p152
    %p154 = scmp.ne.s32.totalorder %s146, %s148
    %p155 = scmp.eq.s32.totalorder %s19, 1
    %p156 = por %p154, %p155
    %p157 = scmp.ne.s32.totalorder %s148, %s149
    %p158 = scmp.eq.s32.totalorder %s19, 0
    %p159 = por %p157, %p158
    %p160 = scmp.ne.s32.totalorder %s148, %s149
    %p161 = scmp.eq.s32.totalorder %s20, 1
    %p162 = por %p160, %p161
    %p164 = scmp.ne.s32.totalorder %s149, %s163
    %p165 = scmp.eq.s32.totalorder %s20, 0
    %p166 = por %p164, %p165
    %s168 = sadd.s32 %s167, 1
    %p171 = scmp.eq.s32.totalorder %s14, 1
    %p172 = scmp.ne.s32.totalorder %s167, %s169
    %p173 = scmp.eq.s32.totalorder %s14, 0
    %p174 = por %p172, %p173
    %p175 = scmp.ne.s32.totalorder %s167, %s169
    %p176 = scmp.eq.s32.totalorder %s19, 1
    %p177 = por %p175, %p176
    %p178 = scmp.ne.s32.totalorder %s169, %s170
    %p179 = scmp.eq.s32.totalorder %s19, 0
    %p180 = por %p178, %p179
    %p181 = scmp.ne.s32.totalorder %s169, %s170
    %p182 = scmp.eq.s32.totalorder %s20, 1
    %p183 = por %p181, %p182
    %p185 = scmp.ne.s32.totalorder %s170, %s184
    %p186 = scmp.eq.s32.totalorder %s20, 0
    %p187 = por %p185, %p186
    %s189 = sadd.s32 %s188, 1
    %p192 = scmp.eq.s32.totalorder %s14, 1
    %p193 = scmp.ne.s32.totalorder %s188, %s190
    %p194 = scmp.eq.s32.totalorder %s14, 0
    %p195 = por %p193, %p194
    %p196 = scmp.ne.s32.totalorder %s188, %s190
    %p197 = scmp.eq.s32.totalorder %s19, 1
    %p198 = por %p196, %p197
    %p199 = scmp.ne.s32.totalorder %s190, %s191
    %p200 = scmp.eq.s32.totalorder %s19, 0
    %p201 = por %p199, %p200
    %p202 = scmp.ne.s32.totalorder %s190, %s191
    %p203 = scmp.eq.s32.totalorder %s20, 1
    %p204 = por %p202, %p203
    %p206 = scmp.ne.s32.totalorder %s191, %s205
    %p207 = scmp.eq.s32.totalorder %s20, 0
    %p208 = por %p206, %p207
    %s210 = sadd.s32 %s209, 1
    %p213 = scmp.eq.s32.totalorder %s14, 1
    %p214 = scmp.ne.s32.totalorder %s209, %s211
    %p215 = scmp.eq.s32.totalorder %s14, 0
    %p216 = por %p214, %p215
    %p217 = scmp.ne.s32.totalorder %s209, %s211
    %p218 = scmp.eq.s32.totalorder %s19, 1
    %p219 = por %p217, %p218
    %p220 = scmp.ne.s32.totalorder %s211, %s212
    %p221 = scmp.eq.s32.totalorder %s19, 0
    %p222 = por %p220, %p221
    %p223 = scmp.ne.s32.totalorder %s211, %s212
    %p224 = scmp.eq.s32.totalorder %s20, 1
    %p225 = por %p223, %p224
    %p227 = scmp.ne.s32.totalorder %s212, %s226
    %p228 = scmp.eq.s32.totalorder %s20, 0
    %p229 = por %p227, %p228
    %s230 = ssub.s32 %s21, %s33
    %s231 = ssub.s32 %s22, %s29
    %s232 = sor.u32 %s230, %s231
    %p233 = scmp.eq.s32.totalorder %s232, 0
    %s235 = sadd.s32 %s234, 1
    %s236 = scalar_select %p233, %s234, %s235
    %p239 = pneg %p233
    %p240 = scmp.eq.s32.totalorder %s14, 1
    %p241 = por %p239, %p240
    %p242 = scmp.ne.s32.totalorder %s234, %s237
    %p243 = scmp.eq.s32.totalorder %s14, 0
    %p244 = por %p242, %p243
    %p245 = scmp.ne.s32.totalorder %s234, %s237
    %p246 = scmp.eq.s32.totalorder %s19, 1
    %p247 = por %p245, %p246
    %p248 = scmp.ne.s32.totalorder %s237, %s238
    %p249 = scmp.eq.s32.totalorder %s19, 0
    %p250 = por %p248, %p249
    %p251 = scmp.ne.s32.totalorder %s237, %s238
    %p252 = scmp.eq.s32.totalorder %s20, 1
    %p253 = por %p251, %p252
    %p255 = scmp.ne.s32.totalorder %s238, %s254
    %p256 = scmp.eq.s32.totalorder %s20, 0
    %p257 = por %p255, %p256
    %p258 = scmp.le.s32.totalorder 1, %s14
    %p259 = scmp.lt.s32.totalorder %s14, 3
    %p260 = pnand %p258, %p259
    %p261 = pneg %p260
    // Predicated region
    $region9: #{dass_downsample.1} parent=5 // pred_check
      _
    $region10: #{dass_downsample.1} parent=5 // pred_check_branch
      %263 = sbr.rel (%p260) target = $region12
    $region11: #{dass_downsample.1} parent=5 // pred_region
      %s264 = ssub.s32 %s14, 1
      // Predicated region
      $region13: #{dass_downsample.1} parent=11 // pred_check
        %p265 = pneg %p159
      $region14: #{dass_downsample.1} parent=11 // pred_check_branch
        %267 = sbr.rel (%p265) target = $region16
      $region15: #{dass_downsample.1} parent=11 // pred_region
        _
      $region16: #{dass_downsample.1} parent=11 // pred_fallthru
        _
      // Predicated region
      $region17: #{dass_downsample.1} parent=11 // pred_check
        %p268 = pneg %p180
      $region18: #{dass_downsample.1} parent=11 // pred_check_branch
        %270 = sbr.rel (%p268) target = $region20
      $region19: #{dass_downsample.1} parent=11 // pred_region
        _
      $region20: #{dass_downsample.1} parent=11 // pred_fallthru
        _
      // Predicated region
      $region21: #{dass_downsample.1} parent=11 // pred_check
        %p271 = pneg %p201
      $region22: #{dass_downsample.1} parent=11 // pred_check_branch
        %273 = sbr.rel (%p271) target = $region24
      $region23: #{dass_downsample.1} parent=11 // pred_region
        _
      $region24: #{dass_downsample.1} parent=11 // pred_fallthru
        _
      // Predicated region
      $region25: #{dass_downsample.1} parent=11 // pred_check
        %p274 = pneg %p222
      $region26: #{dass_downsample.1} parent=11 // pred_check_branch
        %276 = sbr.rel (%p274) target = $region28
      $region27: #{dass_downsample.1} parent=11 // pred_region
        _
      $region28: #{dass_downsample.1} parent=11 // pred_fallthru
        _
    $region12: #{dass_downsample.1} parent=5 // pred_fallthru
      _
    %p277 = scmp.lt.s32.totalorder %s14, 2
    // Predicated region
    $region29: #{dass_downsample.1} parent=5 // pred_check
      %p278 = pneg %p277
    $region30: #{dass_downsample.1} parent=5 // pred_check_branch
      %280 = sbr.rel (%p278) target = $region32
    $region31: #{dass_downsample.1} parent=5 // pred_region
      // Predicated region
      $region33: #{dass_downsample.1} parent=31 // pred_check
        %p281 = pneg %p48
      $region34: #{dass_downsample.1} parent=31 // pred_check_branch
        %283 = sbr.rel (%p281) target = $region36
      $region35: #{dass_downsample.1} parent=31 // pred_region
        %p284 = scmp.lt.s32.totalorder %s21, 1
        %s285 = scalar_select %p284, %s21, 1
        %p286 = scmp.lt.s32.totalorder %s22, 0
        %s287 = scalar_select %p286, %s22, 0
        %s288 = smul.addr %s287, 18
        %s289 = smul.addr %s285, 18
        %s290 = sadd.s32 %s288, %s289
        %s291 = smul.addr %s290, 4
        %s292 = scalar_lea.vmem %s0, %s291
      $region36: #{dass_downsample.1} parent=31 // pred_fallthru
        _
      // Predicated region
      $region37: #{dass_downsample.1} parent=31 // pred_check
        %p293 = pneg %p76
      $region38: #{dass_downsample.1} parent=31 // pred_check_branch
        %295 = sbr.rel (%p293) target = $region40
      $region39: #{dass_downsample.1} parent=31 // pred_region
        %p296 = scmp.lt.s32.totalorder %s21, 1
        %s297 = scalar_select %p296, %s21, 1
        %p298 = scmp.lt.s32.totalorder %s22, 0
        %s299 = scalar_select %p298, %s22, 0
        %s300 = smul.addr %s299, 9
        %s301 = smul.addr %s297, 9
        %s302 = sadd.s32 %s300, %s301
        %s303 = smul.addr %s302, 4
        %s304 = scalar_lea.vmem %s1, %s303
      $region40: #{dass_downsample.1} parent=31 // pred_fallthru
        _
      // Predicated region
      $region41: #{dass_downsample.1} parent=31 // pred_check
        %p305 = pneg %p104
      $region42: #{dass_downsample.1} parent=31 // pred_check_branch
        %307 = sbr.rel (%p305) target = $region44
      $region43: #{dass_downsample.1} parent=31 // pred_region
        %p308 = scmp.lt.s32.totalorder %s21, 1
        %s309 = scalar_select %p308, %s21, 1
        %p310 = scmp.lt.s32.totalorder %s22, 0
        %s311 = scalar_select %p310, %s22, 0
        %s312 = smul.addr %s311, 16
        %s313 = smul.addr %s309, 16
        %s314 = sadd.s32 %s312, %s313
        %s315 = smul.addr %s314, 4
        %s316 = scalar_lea.vmem %s2, %s315
      $region44: #{dass_downsample.1} parent=31 // pred_fallthru
        _
      // Predicated region
      $region45: #{dass_downsample.1} parent=31 // pred_check
        %p317 = pneg %p132
      $region46: #{dass_downsample.1} parent=31 // pred_check_branch
        %319 = sbr.rel (%p317) target = $region48
      $region47: #{dass_downsample.1} parent=31 // pred_region
        %p320 = scmp.lt.s32.totalorder %s21, 1
        %s321 = scalar_select %p320, %s21, 1
        %p322 = scmp.lt.s32.totalorder %s22, 0
        %s323 = scalar_select %p322, %s22, 0
        %s324 = smul.addr %s323, 8
        %s325 = smul.addr %s321, 8
        %s326 = sadd.s32 %s324, %s325
        %s327 = smul.addr %s326, 4
        %s328 = scalar_lea.vmem %s3, %s327
      $region48: #{dass_downsample.1} parent=31 // pred_fallthru
        _
    $region32: #{dass_downsample.1} parent=5 // pred_fallthru
      _
    %p329 = scmp.le.s32.totalorder 1, %s14
    %p330 = scmp.lt.s32.totalorder %s14, 3
    %p331 = pnand %p329, %p330
    %p332 = pneg %p331
    // Predicated region
    $region49: #{dass_downsample.1} parent=5 // pred_check
      _
    $region50: #{dass_downsample.1} parent=5 // pred_check_branch
      %334 = sbr.rel (%p331) target = $region52
    $region51: #{dass_downsample.1} parent=5 // pred_region
      %s335 = ssub.s32 %s14, 1
      %p336 = scmp.lt.s32.totalorder %s23, 1
      %s337 = scalar_select %p336, %s23, 1
      %p338 = scmp.lt.s32.totalorder %s24, 0
      %s339 = scalar_select %p338, %s24, 0
      %s340 = smul.addr %s339, 18
      %s341 = smul.addr %s337, 18
      %s342 = sadd.s32 %s340, %s341
      %s343 = smul.addr %s342, 4
      %s344 = scalar_lea.vmem %s0, %s343
      %p345 = pneg %p54
      %p346 = pneg %p51
      %p347 = scmp.lt.s32.totalorder %s23, 1
      %s348 = scalar_select %p347, %s23, 1
      %p349 = scmp.lt.s32.totalorder %s24, 0
      %s350 = scalar_select %p349, %s24, 0
      %s351 = smul.addr %s350, 9
      %s352 = smul.addr %s348, 9
      %s353 = sadd.s32 %s351, %s352
      %s354 = smul.addr %s353, 4
      %s355 = scalar_lea.vmem %s1, %s354
      %p356 = pneg %p82
      %p357 = pneg %p79
      %p358 = scmp.lt.s32.totalorder %s23, 1
      %s359 = scalar_select %p358, %s23, 1
      %p360 = scmp.lt.s32.totalorder %s24, 0
      %s361 = scalar_select %p360, %s24, 0
      %s362 = smul.addr %s361, 16
      %s363 = smul.addr %s359, 16
      %s364 = sadd.s32 %s362, %s363
      %s365 = smul.addr %s364, 4
      %s366 = scalar_lea.vmem %s2, %s365
      %p367 = pneg %p110
      %p368 = pneg %p107
      %p369 = scmp.lt.s32.totalorder %s23, 1
      %s370 = scalar_select %p369, %s23, 1
      %p371 = scmp.lt.s32.totalorder %s24, 0
      %s372 = scalar_select %p371, %s24, 0
      %s373 = smul.addr %s372, 8
      %s374 = smul.addr %s370, 8
      %s375 = sadd.s32 %s373, %s374
      %s376 = smul.addr %s375, 4
      %s377 = scalar_lea.vmem %s3, %s376
      %p378 = pneg %p138
      %p379 = pneg %p135
      %p380 = pneg %p159
      %p381 = pneg %p156
      %p382 = pneg %p180
      %p383 = pneg %p177
      %p384 = pneg %p201
      %p385 = pneg %p198
      %p386 = pneg %p222
      %p387 = pneg %p219
      %p388 = pneg %p250
      %p389 = pneg %p247
      %s390 = smul.u32 8, %s24
      %p391 = scmp.lt.s32.totalorder %s23, 1
      %s392 = scalar_select %p391, %s23, 1
      %p393 = scmp.lt.s32.totalorder %s390, 7
      %s394 = scalar_select %p393, %s390, 7
      %s395 = smul.addr %s392, 8
      %s396 = sadd.s32 %s394, %s395
      %s397 = smul.addr %s396, 8
      %s398 = scalar_lea.vmem %s8, %s397
      %p399 = scmp.lt.s32.totalorder %s23, 1
      %s400 = scalar_select %p399, %s23, 1
      %p401 = scmp.lt.s32.totalorder %s24, 0
      %s402 = scalar_select %p401, %s24, 0
      %s403 = smul.addr %s402, 18
      %s404 = smul.addr %s400, 18
      %s405 = sadd.s32 %s403, %s404
      %s406 = smul.addr %s405, 4
      %s407 = scalar_lea.vmem %s0, %s406
      %p408 = scmp.lt.s32.totalorder %s23, 1
      %s409 = scalar_select %p408, %s23, 1
      %p410 = scmp.lt.s32.totalorder %s24, 0
      %s411 = scalar_select %p410, %s24, 0
      %s412 = smul.addr %s411, 9
      %s413 = smul.addr %s409, 9
      %s414 = sadd.s32 %s412, %s413
      %s415 = smul.addr %s414, 4
      %s416 = scalar_lea.vmem %s1, %s415
      %p417 = scmp.lt.s32.totalorder %s23, 1
      %s418 = scalar_select %p417, %s23, 1
      %p419 = scmp.lt.s32.totalorder %s24, 0
      %s420 = scalar_select %p419, %s24, 0
      %s421 = smul.addr %s420, 16
      %s422 = smul.addr %s418, 16
      %s423 = sadd.s32 %s421, %s422
      %s424 = smul.addr %s423, 4
      %s425 = scalar_lea.vmem %s2, %s424
      %p426 = scmp.lt.s32.totalorder %s23, 1
      %s427 = scalar_select %p426, %s23, 1
      %p428 = scmp.lt.s32.totalorder %s24, 0
      %s429 = scalar_select %p428, %s24, 0
      %s430 = smul.addr %s429, 8
      %s431 = smul.addr %s427, 8
      %s432 = sadd.s32 %s430, %s431
      %s433 = smul.addr %s432, 4
      %s434 = scalar_lea.vmem %s3, %s433
      %s435 = smul.u32 8, %s24
      %p436 = scmp.lt.s32.totalorder %s23, 1
      %s437 = scalar_select %p436, %s23, 1
      %p438 = scmp.lt.s32.totalorder %s435, 7
      %s439 = scalar_select %p438, %s435, 7
      %s440 = smul.addr %s437, 8
      %s441 = sadd.s32 %s439, %s440
      %s442 = smul.addr %s441, 8
      %s443 = scalar_lea.vmem %s8, %s442
      %s444 = smul.u32 8, %s24
      %v446 = vld [vmem:[%s407] sm:$0xf]
      %v447 = vld [vmem:[%s407 + $0x8] sm:$0xf]
      %v448 = vld [vmem:[%s407 + $0x10] sm:$0xf]
      %v449 = vld [vmem:[%s407 + $0x18] sm:$0xf]
      %v450 = vld [vmem:[%s407 + $0x20] sm:$0xf]
      %v451 = vld [vmem:[%s407 + $0x28] sm:$0xf]
      %v452 = vld [vmem:[%s407 + $0x30] sm:$0xf]
      %v453 = vld [vmem:[%s407 + $0x38] sm:$0xf]
      %v454 = vld [vmem:[%s416] sm:$0xf]
      %v455 = vld [vmem:[%s416 + $0x4] sm:$0xf]
      %v456 = vld [vmem:[%s416 + $0x8] sm:$0xf]
      %v457 = vld [vmem:[%s416 + $0xc] sm:$0xf]
      %v458 = vld [vmem:[%s416 + $0x10] sm:$0xf]
      %v459 = vld [vmem:[%s416 + $0x14] sm:$0xf]
      %v460 = vld [vmem:[%s416 + $0x18] sm:$0xf]
      %v461 = vld [vmem:[%s416 + $0x1c] sm:$0xf]
      %v462 = vld [vmem:[%s407 + $0x4] sm:$0x1]
      %v463 = vld [vmem:[%s407 + $0xc] sm:$0x1]
      %v464 = vld [vmem:[%s407 + $0x14] sm:$0x1]
      %v465 = vld [vmem:[%s407 + $0x1c] sm:$0x1]
      %v466 = vld [vmem:[%s407 + $0x24] sm:$0x1]
      %v467 = vld [vmem:[%s407 + $0x2c] sm:$0x1]
      %v468 = vld [vmem:[%s407 + $0x34] sm:$0x1]
      %v469 = vld [vmem:[%s407 + $0x3c] sm:$0x1]
      %vm470 = vsmask.f32 3328
      %vm471 = vsmask.f32 7440
      %vm472 = vmor %vm470, %vm471
      %v474 = vshrl.u32 %v446, 16
      %v476 = vrot.slane %v474, 4
      %v477 = vshll.u32 %v446, 16
      %v479 = vrot.slane %v477, 5
      %v480 = vor.u32 %v476, %v479
      %v481 = vrot.slane %v480, 4
      %v483 = vshll.u32 %v462, 16
      %v485 = vrot.slane %v483, 5
      %v486 = vsel %vm472, %v481, %v485
      %v488 = vshrl.u32 %v447, 16
      %v490 = vrot.slane %v488, 4
      %v491 = vshll.u32 %v447, 16
      %v493 = vrot.slane %v491, 5
      %v494 = vor.u32 %v490, %v493
      %v495 = vrot.slane %v494, 4
      %v497 = vshll.u32 %v463, 16
      %v499 = vrot.slane %v497, 5
      %v500 = vsel %vm472, %v495, %v499
      %v502 = vshrl.u32 %v448, 16
      %v504 = vrot.slane %v502, 4
      %v505 = vshll.u32 %v448, 16
      %v507 = vrot.slane %v505, 5
      %v508 = vor.u32 %v504, %v507
      %v509 = vrot.slane %v508, 4
      %v511 = vshll.u32 %v464, 16
      %v513 = vrot.slane %v511, 5
      %v514 = vsel %vm472, %v509, %v513
      %v516 = vshrl.u32 %v449, 16
      %v518 = vrot.slane %v516, 4
      %v519 = vshll.u32 %v449, 16
      %v521 = vrot.slane %v519, 5
      %v522 = vor.u32 %v518, %v521
      %v523 = vrot.slane %v522, 4
      %v525 = vshll.u32 %v465, 16
      %v527 = vrot.slane %v525, 5
      %v528 = vsel %vm472, %v523, %v527
      %v530 = vshrl.u32 %v450, 16
      %v532 = vrot.slane %v530, 4
      %v533 = vshll.u32 %v450, 16
      %v535 = vrot.slane %v533, 5
      %v536 = vor.u32 %v532, %v535
      %v537 = vrot.slane %v536, 4
      %v539 = vshll.u32 %v466, 16
      %v541 = vrot.slane %v539, 5
      %v542 = vsel %vm472, %v537, %v541
      %v544 = vshrl.u32 %v451, 16
      %v546 = vrot.slane %v544, 4
      %v547 = vshll.u32 %v451, 16
      %v549 = vrot.slane %v547, 5
      %v550 = vor.u32 %v546, %v549
      %v551 = vrot.slane %v550, 4
      %v553 = vshll.u32 %v467, 16
      %v555 = vrot.slane %v553, 5
      %v556 = vsel %vm472, %v551, %v555
      %v558 = vshrl.u32 %v452, 16
      %v560 = vrot.slane %v558, 4
      %v561 = vshll.u32 %v452, 16
      %v563 = vrot.slane %v561, 5
      %v564 = vor.u32 %v560, %v563
      %v565 = vrot.slane %v564, 4
      %v567 = vshll.u32 %v468, 16
      %v569 = vrot.slane %v567, 5
      %v570 = vsel %vm472, %v565, %v569
      %v572 = vshrl.u32 %v453, 16
      %v574 = vrot.slane %v572, 4
      %v575 = vshll.u32 %v453, 16
      %v577 = vrot.slane %v575, 5
      %v578 = vor.u32 %v574, %v577
      %v579 = vrot.slane %v578, 4
      %v581 = vshll.u32 %v469, 16
      %v583 = vrot.slane %v581, 5
      %v584 = vsel %vm472, %v579, %v583
      %v585 = vld [vmem:[%s425] sm:$0xf]
      %v586 = vld [vmem:[%s425 + $0x8] sm:$0xf]
      %v587 = vld [vmem:[%s425 + $0x10] sm:$0xf]
      %v588 = vld [vmem:[%s425 + $0x18] sm:$0xf]
      %v589 = vld [vmem:[%s425 + $0x20] sm:$0xf]
      %v590 = vld [vmem:[%s425 + $0x28] sm:$0xf]
      %v591 = vld [vmem:[%s425 + $0x30] sm:$0xf]
      %v592 = vld [vmem:[%s425 + $0x38] sm:$0xf]
      %v593 = vld [vmem:[%s434] sm:$0xf]
      %v594 = vld [vmem:[%s434 + $0x4] sm:$0xf]
      %v595 = vld [vmem:[%s434 + $0x8] sm:$0xf]
      %v596 = vld [vmem:[%s434 + $0xc] sm:$0xf]
      %v597 = vld [vmem:[%s434 + $0x10] sm:$0xf]
      %v598 = vld [vmem:[%s434 + $0x14] sm:$0xf]
      %v599 = vld [vmem:[%s434 + $0x18] sm:$0xf]
      %v600 = vld [vmem:[%s434 + $0x1c] sm:$0xf]
      %v601 = vld [vmem:[%s425 + $0x4] sm:$0x1]
      %v602 = vld [vmem:[%s425 + $0xc] sm:$0x1]
      %v603 = vld [vmem:[%s425 + $0x14] sm:$0x1]
      %v604 = vld [vmem:[%s425 + $0x1c] sm:$0x1]
      %v605 = vld [vmem:[%s425 + $0x24] sm:$0x1]
      %v606 = vld [vmem:[%s425 + $0x2c] sm:$0x1]
      %v607 = vld [vmem:[%s425 + $0x34] sm:$0x1]
      %v608 = vld [vmem:[%s425 + $0x3c] sm:$0x1]
      %v610 = vshrl.u32 %v585, 16
      %v612 = vrot.slane %v610, 4
      %v613 = vshll.u32 %v585, 16
      %v615 = vrot.slane %v613, 5
      %v616 = vor.u32 %v612, %v615
      %v617 = vrot.slane %v616, 4
      %v619 = vshll.u32 %v601, 16
      %v621 = vrot.slane %v619, 5
      %v622 = vsel %vm472, %v617, %v621
      %v624 = vshrl.u32 %v586, 16
      %v626 = vrot.slane %v624, 4
      %v627 = vshll.u32 %v586, 16
      %v629 = vrot.slane %v627, 5
      %v630 = vor.u32 %v626, %v629
      %v631 = vrot.slane %v630, 4
      %v633 = vshll.u32 %v602, 16
      %v635 = vrot.slane %v633, 5
      %v636 = vsel %vm472, %v631, %v635
      %v638 = vshrl.u32 %v587, 16
      %v640 = vrot.slane %v638, 4
      %v641 = vshll.u32 %v587, 16
      %v643 = vrot.slane %v641, 5
      %v644 = vor.u32 %v640, %v643
      %v645 = vrot.slane %v644, 4
      %v647 = vshll.u32 %v603, 16
      %v649 = vrot.slane %v647, 5
      %v650 = vsel %vm472, %v645, %v649
      %v652 = vshrl.u32 %v588, 16
      %v654 = vrot.slane %v652, 4
      %v655 = vshll.u32 %v588, 16
      %v657 = vrot.slane %v655, 5
      %v658 = vor.u32 %v654, %v657
      %v659 = vrot.slane %v658, 4
      %v661 = vshll.u32 %v604, 16
      %v663 = vrot.slane %v661, 5
      %v664 = vsel %vm472, %v659, %v663
      %v666 = vshrl.u32 %v589, 16
      %v668 = vrot.slane %v666, 4
      %v669 = vshll.u32 %v589, 16
      %v671 = vrot.slane %v669, 5
      %v672 = vor.u32 %v668, %v671
      %v673 = vrot.slane %v672, 4
      %v675 = vshll.u32 %v605, 16
      %v677 = vrot.slane %v675, 5
      %v678 = vsel %vm472, %v673, %v677
      %v680 = vshrl.u32 %v590, 16
      %v682 = vrot.slane %v680, 4
      %v683 = vshll.u32 %v590, 16
      %v685 = vrot.slane %v683, 5
      %v686 = vor.u32 %v682, %v685
      %v687 = vrot.slane %v686, 4
      %v689 = vshll.u32 %v606, 16
      %v691 = vrot.slane %v689, 5
      %v692 = vsel %vm472, %v687, %v691
      %v694 = vshrl.u32 %v591, 16
      %v696 = vrot.slane %v694, 4
      %v697 = vshll.u32 %v591, 16
      %v699 = vrot.slane %v697, 5
      %v700 = vor.u32 %v696, %v699
      %v701 = vrot.slane %v700, 4
      %v703 = vshll.u32 %v607, 16
      %v705 = vrot.slane %v703, 5
      %v706 = vsel %vm472, %v701, %v705
      %v708 = vshrl.u32 %v592, 16
      %v710 = vrot.slane %v708, 4
      %v711 = vshll.u32 %v592, 16
      %v713 = vrot.slane %v711, 5
      %v714 = vor.u32 %v710, %v713
      %v715 = vrot.slane %v714, 4
      %v717 = vshll.u32 %v608, 16
      %v719 = vrot.slane %v717, 5
      %v720 = vsel %vm472, %v715, %v719
      %s721 = scalar_lea.vmem %s407, 8
      %v722 = vld [vmem:[%s721] sm:$0xf]
      %v723 = vld [vmem:[%s721 + $0x8] sm:$0xf]
      %v724 = vld [vmem:[%s721 + $0x10] sm:$0xf]
      %v725 = vld [vmem:[%s721 + $0x18] sm:$0xf]
      %v726 = vld [vmem:[%s721 + $0x20] sm:$0xf]
      %v727 = vld [vmem:[%s721 + $0x28] sm:$0xf]
      %v728 = vld [vmem:[%s721 + $0x30] sm:$0xf]
      %v729 = vld [vmem:[%s721 + $0x38] sm:$0xf]
      %s730 = scalar_lea.vmem %s416, 4
      %v731 = vld [vmem:[%s730] sm:$0xf]
      %v732 = vld [vmem:[%s730 + $0x4] sm:$0xf]
      %v733 = vld [vmem:[%s730 + $0x8] sm:$0xf]
      %v734 = vld [vmem:[%s730 + $0xc] sm:$0xf]
      %v735 = vld [vmem:[%s730 + $0x10] sm:$0xf]
      %v736 = vld [vmem:[%s730 + $0x14] sm:$0xf]
      %v737 = vld [vmem:[%s730 + $0x18] sm:$0xf]
      %v738 = vld [vmem:[%s730 + $0x1c] sm:$0xf]
      %v739 = vld [vmem:[%s721 + $0x4] sm:$0x1]
      %v740 = vld [vmem:[%s721 + $0xc] sm:$0x1]
      %v741 = vld [vmem:[%s721 + $0x14] sm:$0x1]
      %v742 = vld [vmem:[%s721 + $0x1c] sm:$0x1]
      %v743 = vld [vmem:[%s721 + $0x24] sm:$0x1]
      %v744 = vld [vmem:[%s721 + $0x2c] sm:$0x1]
      %v745 = vld [vmem:[%s721 + $0x34] sm:$0x1]
      %v746 = vld [vmem:[%s721 + $0x3c] sm:$0x1]
      %v748 = vshrl.u32 %v722, 16
      %v750 = vrot.slane %v748, 4
      %v751 = vshll.u32 %v722, 16
      %v753 = vrot.slane %v751, 5
      %v754 = vor.u32 %v750, %v753
      %v755 = vrot.slane %v754, 4
      %v757 = vshll.u32 %v739, 16
      %v759 = vrot.slane %v757, 5
      %v760 = vsel %vm472, %v755, %v759
      %v762 = vshrl.u32 %v723, 16
      %v764 = vrot.slane %v762, 4
      %v765 = vshll.u32 %v723, 16
      %v767 = vrot.slane %v765, 5
      %v768 = vor.u32 %v764, %v767
      %v769 = vrot.slane %v768, 4
      %v771 = vshll.u32 %v740, 16
      %v773 = vrot.slane %v771, 5
      %v774 = vsel %vm472, %v769, %v773
      %v776 = vshrl.u32 %v724, 16
      %v778 = vrot.slane %v776, 4
      %v779 = vshll.u32 %v724, 16
      %v781 = vrot.slane %v779, 5
      %v782 = vor.u32 %v778, %v781
      %v783 = vrot.slane %v782, 4
      %v785 = vshll.u32 %v741, 16
      %v787 = vrot.slane %v785, 5
      %v788 = vsel %vm472, %v783, %v787
      %v790 = vshrl.u32 %v725, 16
      %v792 = vrot.slane %v790, 4
      %v793 = vshll.u32 %v725, 16
      %v795 = vrot.slane %v793, 5
      %v796 = vor.u32 %v792, %v795
      %v797 = vrot.slane %v796, 4
      %v799 = vshll.u32 %v742, 16
      %v801 = vrot.slane %v799, 5
      %v802 = vsel %vm472, %v797, %v801
      %v804 = vshrl.u32 %v726, 16
      %v806 = vrot.slane %v804, 4
      %v807 = vshll.u32 %v726, 16
      %v809 = vrot.slane %v807, 5
      %v810 = vor.u32 %v806, %v809
      %v811 = vrot.slane %v810, 4
      %v813 = vshll.u32 %v743, 16
      %v815 = vrot.slane %v813, 5
      %v816 = vsel %vm472, %v811, %v815
      %v818 = vshrl.u32 %v727, 16
      %v820 = vrot.slane %v818, 4
      %v821 = vshll.u32 %v727, 16
      %v823 = vrot.slane %v821, 5
      %v824 = vor.u32 %v820, %v823
      %v825 = vrot.slane %v824, 4
      %v827 = vshll.u32 %v744, 16
      %v829 = vrot.slane %v827, 5
      %v830 = vsel %vm472, %v825, %v829
      %v832 = vshrl.u32 %v728, 16
      %v834 = vrot.slane %v832, 4
      %v835 = vshll.u32 %v728, 16
      %v837 = vrot.slane %v835, 5
      %v838 = vor.u32 %v834, %v837
      %v839 = vrot.slane %v838, 4
      %v841 = vshll.u32 %v745, 16
      %v843 = vrot.slane %v841, 5
      %v844 = vsel %vm472, %v839, %v843
      %v846 = vshrl.u32 %v729, 16
      %v848 = vrot.slane %v846, 4
      %v849 = vshll.u32 %v729, 16
      %v851 = vrot.slane %v849, 5
      %v852 = vor.u32 %v848, %v851
      %v853 = vrot.slane %v852, 4
      %v855 = vshll.u32 %v746, 16
      %v857 = vrot.slane %v855, 5
      %v858 = vsel %vm472, %v853, %v857
      %v867 = vunpack.c.l.b16 %v446
      %v868 = vunpack.c.l.b16 %v447
      %v869 = vunpack.c.l.b16 %v448
      %v870 = vunpack.c.l.b16 %v449
      %v871 = vunpack.c.l.b16 %v450
      %v872 = vunpack.c.l.b16 %v451
      %v873 = vunpack.c.l.b16 %v452
      %v874 = vunpack.c.l.b16 %v453
      %v875 = vpack.c.b16 %v868, %v867
      %v876 = vpack.c.b16 %v870, %v869
      %v877 = vpack.c.b16 %v872, %v871
      %v878 = vpack.c.b16 %v874, %v873
      %v887 = vunpack.c.l.b16 %v454
      %v888 = vunpack.c.l.b16 %v455
      %v889 = vunpack.c.l.b16 %v456
      %v890 = vunpack.c.l.b16 %v457
      %v891 = vunpack.c.l.b16 %v458
      %v892 = vunpack.c.l.b16 %v459
      %v893 = vunpack.c.l.b16 %v460
      %v894 = vunpack.c.l.b16 %v461
      %v895 = vpack.c.b16 %v888, %v887
      %v896 = vpack.c.b16 %v890, %v889
      %v897 = vpack.c.b16 %v892, %v891
      %v898 = vpack.c.b16 %v894, %v893
      %899 = vrot.lane.b32.xlu0 %v895, 4
      %v900 = vpop.permute.xlu0 %899
      %901 = vrot.lane.b32.xlu0 %v896, 4
      %v902 = vpop.permute.xlu0 %901
      %903 = vrot.lane.b32.xlu0 %v897, 4
      %v904 = vpop.permute.xlu0 %903
      %905 = vrot.lane.b32.xlu0 %v898, 4
      %v906 = vpop.permute.xlu0 %905
      %v907 = vunpack.c.l.b16 %v486
      %v908 = vunpack.c.l.b16 %v500
      %v909 = vunpack.c.l.b16 %v514
      %v910 = vunpack.c.l.b16 %v528
      %v911 = vunpack.c.l.b16 %v542
      %v912 = vunpack.c.l.b16 %v556
      %v913 = vunpack.c.l.b16 %v570
      %v914 = vunpack.c.l.b16 %v584
      %v915 = vpack.c.b16 %v908, %v907
      %v916 = vpack.c.b16 %v910, %v909
      %v917 = vpack.c.b16 %v912, %v911
      %v918 = vpack.c.b16 %v914, %v913
      %919 = vrot.lane.b32.xlu0 %v915, 8
      %v920 = vpop.permute.xlu0 %919
      %921 = vrot.lane.b32.xlu0 %v916, 8
      %v922 = vpop.permute.xlu0 %921
      %923 = vrot.lane.b32.xlu0 %v917, 8
      %v924 = vpop.permute.xlu0 %923
      %925 = vrot.lane.b32.xlu0 %v918, 8
      %v926 = vpop.permute.xlu0 %925
      %v935 = vunpack.c.l.b16 %v585
      %v936 = vunpack.c.l.b16 %v586
      %v937 = vunpack.c.l.b16 %v587
      %v938 = vunpack.c.l.b16 %v588
      %v939 = vunpack.c.l.b16 %v589
      %v940 = vunpack.c.l.b16 %v590
      %v941 = vunpack.c.l.b16 %v591
      %v942 = vunpack.c.l.b16 %v592
      %v943 = vpack.c.b16 %v936, %v935
      %v944 = vpack.c.b16 %v938, %v937
      %v945 = vpack.c.b16 %v940, %v939
      %v946 = vpack.c.b16 %v942, %v941
      %947 = vrot.lane.b32.xlu0 %v943, 12
      %v948 = vpop.permute.xlu0 %947
      %949 = vrot.lane.b32.xlu0 %v944, 12
      %v950 = vpop.permute.xlu0 %949
      %951 = vrot.lane.b32.xlu0 %v945, 12
      %v952 = vpop.permute.xlu0 %951
      %953 = vrot.lane.b32.xlu0 %v946, 12
      %v954 = vpop.permute.xlu0 %953
      %v963 = vunpack.c.l.b16 %v593
      %v964 = vunpack.c.l.b16 %v594
      %v965 = vunpack.c.l.b16 %v595
      %v966 = vunpack.c.l.b16 %v596
      %v967 = vunpack.c.l.b16 %v597
      %v968 = vunpack.c.l.b16 %v598
      %v969 = vunpack.c.l.b16 %v599
      %v970 = vunpack.c.l.b16 %v600
      %v971 = vpack.c.b16 %v964, %v963
      %v972 = vpack.c.b16 %v966, %v965
      %v973 = vpack.c.b16 %v968, %v967
      %v974 = vpack.c.b16 %v970, %v969
      %975 = vrot.lane.b32.xlu0 %v971, 16
      %v976 = vpop.permute.xlu0 %975
      %977 = vrot.lane.b32.xlu0 %v972, 16
      %v978 = vpop.permute.xlu0 %977
      %979 = vrot.lane.b32.xlu0 %v973, 16
      %v980 = vpop.permute.xlu0 %979
      %981 = vrot.lane.b32.xlu0 %v974, 16
      %v982 = vpop.permute.xlu0 %981
      %v983 = vunpack.c.l.b16 %v622
      %v984 = vunpack.c.l.b16 %v636
      %v985 = vunpack.c.l.b16 %v650
      %v986 = vunpack.c.l.b16 %v664
      %v987 = vunpack.c.l.b16 %v678
      %v988 = vunpack.c.l.b16 %v692
      %v989 = vunpack.c.l.b16 %v706
      %v990 = vunpack.c.l.b16 %v720
      %v991 = vpack.c.b16 %v984, %v983
      %v992 = vpack.c.b16 %v986, %v985
      %v993 = vpack.c.b16 %v988, %v987
      %v994 = vpack.c.b16 %v990, %v989
      %995 = vrot.lane.b32.xlu0 %v991, 20
      %v996 = vpop.permute.xlu0 %995
      %997 = vrot.lane.b32.xlu0 %v992, 20
      %v998 = vpop.permute.xlu0 %997
      %999 = vrot.lane.b32.xlu0 %v993, 20
      %v1000 = vpop.permute.xlu0 %999
      %1001 = vrot.lane.b32.xlu0 %v994, 20
      %v1002 = vpop.permute.xlu0 %1001
      %v1011 = vunpack.c.l.b16 %v722
      %v1012 = vunpack.c.l.b16 %v723
      %v1013 = vunpack.c.l.b16 %v724
      %v1014 = vunpack.c.l.b16 %v725
      %v1015 = vunpack.c.l.b16 %v726
      %v1016 = vunpack.c.l.b16 %v727
      %v1017 = vunpack.c.l.b16 %v728
      %v1018 = vunpack.c.l.b16 %v729
      %v1019 = vpack.c.b16 %v1012, %v1011
      %v1020 = vpack.c.b16 %v1014, %v1013
      %v1021 = vpack.c.b16 %v1016, %v1015
      %v1022 = vpack.c.b16 %v1018, %v1017
      %1023 = vrot.lane.b32.xlu0 %v1019, 24
      %v1024 = vpop.permute.xlu0 %1023
      %1025 = vrot.lane.b32.xlu0 %v1020, 24
      %v1026 = vpop.permute.xlu0 %1025
      %1027 = vrot.lane.b32.xlu0 %v1021, 24
      %v1028 = vpop.permute.xlu0 %1027
      %1029 = vrot.lane.b32.xlu0 %v1022, 24
      %v1030 = vpop.permute.xlu0 %1029
      %v1039 = vunpack.c.l.b16 %v731
      %v1040 = vunpack.c.l.b16 %v732
      %v1041 = vunpack.c.l.b16 %v733
      %v1042 = vunpack.c.l.b16 %v734
      %v1043 = vunpack.c.l.b16 %v735
      %v1044 = vunpack.c.l.b16 %v736
      %v1045 = vunpack.c.l.b16 %v737
      %v1046 = vunpack.c.l.b16 %v738
      %v1047 = vpack.c.b16 %v1040, %v1039
      %v1048 = vpack.c.b16 %v1042, %v1041
      %v1049 = vpack.c.b16 %v1044, %v1043
      %v1050 = vpack.c.b16 %v1046, %v1045
      %1051 = vrot.lane.b32.xlu0 %v1047, 28
      %v1052 = vpop.permute.xlu0 %1051
      %1053 = vrot.lane.b32.xlu0 %v1048, 28
      %v1054 = vpop.permute.xlu0 %1053
      %1055 = vrot.lane.b32.xlu0 %v1049, 28
      %v1056 = vpop.permute.xlu0 %1055
      %1057 = vrot.lane.b32.xlu0 %v1050, 28
      %v1058 = vpop.permute.xlu0 %1057
      %v1059 = vunpack.c.l.b16 %v760
      %v1060 = vunpack.c.l.b16 %v774
      %v1061 = vunpack.c.l.b16 %v788
      %v1062 = vunpack.c.l.b16 %v802
      %v1063 = vunpack.c.l.b16 %v816
      %v1064 = vunpack.c.l.b16 %v830
      %v1065 = vunpack.c.l.b16 %v844
      %v1066 = vunpack.c.l.b16 %v858
      %v1067 = vpack.c.b16 %v1060, %v1059
      %v1068 = vpack.c.b16 %v1062, %v1061
      %v1069 = vpack.c.b16 %v1064, %v1063
      %v1070 = vpack.c.b16 %v1066, %v1065
      %1071 = vrot.lane.b32.xlu0 %v1067, 32
      %v1072 = vpop.permute.xlu0 %1071
      %1073 = vrot.lane.b32.xlu0 %v1068, 32
      %v1074 = vpop.permute.xlu0 %1073
      %1075 = vrot.lane.b32.xlu0 %v1069, 32
      %v1076 = vpop.permute.xlu0 %1075
      %1077 = vrot.lane.b32.xlu0 %v1070, 32
      %v1078 = vpop.permute.xlu0 %1077
      %vm1079 = vcmask 31744
      %v1082 = vsel %vm1079, %v875, %v900
      %v1085 = vsel %vm1079, %v876, %v902
      %v1088 = vsel %vm1079, %v877, %v904
      %v1091 = vsel %vm1079, %v878, %v906
      %vm1092 = vcmask 64512
      %v1094 = vsel %vm1092, %v1082, %v920
      %v1096 = vsel %vm1092, %v1085, %v922
      %v1098 = vsel %vm1092, %v1088, %v924
      %v1100 = vsel %vm1092, %v1091, %v926
      %vm1101 = vcmask 97280
      %v1103 = vsel %vm1101, %v1094, %v948
      %v1105 = vsel %vm1101, %v1096, %v950
      %v1107 = vsel %vm1101, %v1098, %v952
      %v1109 = vsel %vm1101, %v1100, %v954
      %vm1110 = vcmask 130048
      %v1112 = vsel %vm1110, %v1103, %v976
      %v1114 = vsel %vm1110, %v1105, %v978
      %v1116 = vsel %vm1110, %v1107, %v980
      %v1118 = vsel %vm1110, %v1109, %v982
      %vm1119 = vcmask 162816
      %v1121 = vsel %vm1119, %v1112, %v996
      %v1123 = vsel %vm1119, %v1114, %v998
      %v1125 = vsel %vm1119, %v1116, %v1000
      %v1127 = vsel %vm1119, %v1118, %v1002
      %vm1128 = vcmask 195584
      %v1130 = vsel %vm1128, %v1121, %v1024
      %v1132 = vsel %vm1128, %v1123, %v1026
      %v1134 = vsel %vm1128, %v1125, %v1028
      %v1136 = vsel %vm1128, %v1127, %v1030
      %vm1137 = vcmask 228352
      %v1139 = vsel %vm1137, %v1130, %v1052
      %v1141 = vsel %vm1137, %v1132, %v1054
      %v1143 = vsel %vm1137, %v1134, %v1056
      %v1145 = vsel %vm1137, %v1136, %v1058
      %vm1146 = vcmask 261120
      %v1148 = vsel %vm1146, %v1139, %v1072
      %v1150 = vsel %vm1146, %v1141, %v1074
      %v1152 = vsel %vm1146, %v1143, %v1076
      %v1154 = vsel %vm1146, %v1145, %v1078
      %v1155 = vld [vmem:[%s4] sm:$0xf]
      %v1156 = vld [vmem:[%s4 + $0x4] sm:$0xf]
      %v1157 = vld [vmem:[%s4 + $0x8] sm:$0xf]
      %v1158 = vld [vmem:[%s4 + $0xc] sm:$0xf]
      %v1159 = vld [vmem:[%s4 + $0x10] sm:$0x3]
      %v1160 = vld [vmem:[%s5] sm:$0x1]
      %v1162 = vperm.slane %v1160, 0
      %v1169 = vunpack.c.l.b16 %v1155
      %v1170 = vunpack.c.l.b16 %v1156
      %v1171 = vunpack.c.l.b16 %v1157
      %v1172 = vunpack.c.l.b16 %v1158
      %v1173 = vunpack.c.l.b16 %v1159
      %v1174 = vpack.c.b16 %v1170, %v1169
      %v1175 = vpack.c.b16 %v1172, %v1171
      %v1176 = vpack.c.b16 %v1173, %v1173
      %vm1179 = vcmask 293888
      %v1180 = vsel %vm1179, %v1148, 0
      %v1182 = vsel %vm1179, %v1150, 0
      %v1184 = vsel %vm1179, %v1152, 0
      %v1186 = vsel %vm1179, %v1154, 0
      %vm1188 = vcmask 1041408
      %v1190 = vsel %vm1188, %v1176, 0
      %1192 = vmatpush.bf16.msra.mxu0 0
      %1193 = vmatpush.bf16.msra.mxu0 0
      %1194 = vmatpush.bf16.msra.mxu0 0
      %1195 = vmatpush.bf16.msra.mxu0 0
      %1196 = vmatpush.bf16.msra.mxu0 0
      %1197 = vmatpush.bf16.msra.mxu0 %v1190
      %1198 = vmatpush.bf16.msra.mxu0 %v1175
      %1199 = vmatpush.bf16.msra.mxu0 %v1174
      %1200 = vmatmul.bf16.gmra.mxu0 %v1180
      %v1201 = vpop.f32.mrf.mxu0
      %v1202 = vadd.f32 %v1162, %v1201
      %v1203 = vpop.f32.mrf.mxu0
      %v1204 = vadd.f32 %v1162, %v1203
      %1205 = vmatmul.bf16.gmra.mxu0 %v1182
      %v1206 = vpop.f32.mrf.mxu0
      %v1207 = vadd.f32 %v1162, %v1206
      %v1208 = vpop.f32.mrf.mxu0
      %v1209 = vadd.f32 %v1162, %v1208
      %1210 = vmatmul.bf16.gmra.mxu0 %v1184
      %v1211 = vpop.f32.mrf.mxu0
      %v1212 = vadd.f32 %v1162, %v1211
      %v1213 = vpop.f32.mrf.mxu0
      %v1214 = vadd.f32 %v1162, %v1213
      %1215 = vmatmul.bf16.gmra.mxu0 %v1186
      %v1216 = vpop.f32.mrf.mxu0
      %v1217 = vadd.f32 %v1162, %v1216
      %v1218 = vpop.f32.mrf.mxu0
      %v1219 = vadd.f32 %v1162, %v1218
      %1220 = vdwg.mxu0
      %v1221 = vsel %vm1092, %v1202, 0.0
      %1222 = vadd.xlane.f32.xlu0 %v1221
      %v1223 = vpop.xlane.xlu0 %1222
      %v1224 = vsel %vm1092, %v1204, 0.0
      %1225 = vadd.xlane.f32.xlu0 %v1224
      %v1226 = vpop.xlane.xlu0 %1225
      %v1227 = vsel %vm1092, %v1207, 0.0
      %1228 = vadd.xlane.f32.xlu0 %v1227
      %v1229 = vpop.xlane.xlu0 %1228
      %v1230 = vsel %vm1092, %v1209, 0.0
      %1231 = vadd.xlane.f32.xlu0 %v1230
      %v1232 = vpop.xlane.xlu0 %1231
      %v1233 = vsel %vm1092, %v1212, 0.0
      %1234 = vadd.xlane.f32.xlu0 %v1233
      %v1235 = vpop.xlane.xlu0 %1234
      %v1236 = vsel %vm1092, %v1214, 0.0
      %1237 = vadd.xlane.f32.xlu0 %v1236
      %v1238 = vpop.xlane.xlu0 %1237
      %v1239 = vsel %vm1092, %v1217, 0.0
      %1240 = vadd.xlane.f32.xlu0 %v1239
      %v1241 = vpop.xlane.xlu0 %1240
      %v1242 = vsel %vm1092, %v1219, 0.0
      %1243 = vadd.xlane.f32.xlu0 %v1242
      %v1244 = vpop.xlane.xlu0 %1243
      %v1245 = vmul.f32 %v1223, 0.125
      %v1246 = vmul.f32 %v1226, 0.125
      %v1247 = vmul.f32 %v1229, 0.125
      %v1248 = vmul.f32 %v1232, 0.125
      %v1249 = vmul.f32 %v1235, 0.125
      %v1250 = vmul.f32 %v1238, 0.125
      %v1251 = vmul.f32 %v1241, 0.125
      %v1252 = vmul.f32 %v1244, 0.125
      %v1253 = vmul.f32 %v1202, %v1202
      %v1254 = vmul.f32 %v1204, %v1204
      %v1255 = vmul.f32 %v1207, %v1207
      %v1256 = vmul.f32 %v1209, %v1209
      %v1257 = vmul.f32 %v1212, %v1212
      %v1258 = vmul.f32 %v1214, %v1214
      %v1259 = vmul.f32 %v1217, %v1217
      %v1260 = vmul.f32 %v1219, %v1219
      %v1261 = vsel %vm1092, %v1253, 0.0
      %1262 = vadd.xlane.f32.xlu0 %v1261
      %v1263 = vpop.xlane.xlu0 %1262
      %v1264 = vsel %vm1092, %v1254, 0.0
      %1265 = vadd.xlane.f32.xlu0 %v1264
      %v1266 = vpop.xlane.xlu0 %1265
      %v1267 = vsel %vm1092, %v1255, 0.0
      %1268 = vadd.xlane.f32.xlu0 %v1267
      %v1269 = vpop.xlane.xlu0 %1268
      %v1270 = vsel %vm1092, %v1256, 0.0
      %1271 = vadd.xlane.f32.xlu0 %v1270
      %v1272 = vpop.xlane.xlu0 %1271
      %v1273 = vsel %vm1092, %v1257, 0.0
      %1274 = vadd.xlane.f32.xlu0 %v1273
      %v1275 = vpop.xlane.xlu0 %1274
      %v1276 = vsel %vm1092, %v1258, 0.0
      %1277 = vadd.xlane.f32.xlu0 %v1276
      %v1278 = vpop.xlane.xlu0 %1277
      %v1279 = vsel %vm1092, %v1259, 0.0
      %1280 = vadd.xlane.f32.xlu0 %v1279
      %v1281 = vpop.xlane.xlu0 %1280
      %v1282 = vsel %vm1092, %v1260, 0.0
      %1283 = vadd.xlane.f32.xlu0 %v1282
      %v1284 = vpop.xlane.xlu0 %1283
      %v1285 = vmul.f32 %v1263, 0.125
      %v1286 = vmul.f32 %v1266, 0.125
      %v1287 = vmul.f32 %v1269, 0.125
      %v1288 = vmul.f32 %v1272, 0.125
      %v1289 = vmul.f32 %v1275, 0.125
      %v1290 = vmul.f32 %v1278, 0.125
      %v1291 = vmul.f32 %v1281, 0.125
      %v1292 = vmul.f32 %v1284, 0.125
      %v1293 = vmul.f32 %v1245, %v1245
      %v1294 = vmul.f32 %v1246, %v1246
      %v1295 = vmul.f32 %v1247, %v1247
      %v1296 = vmul.f32 %v1248, %v1248
      %v1297 = vmul.f32 %v1249, %v1249
      %v1298 = vmul.f32 %v1250, %v1250
      %v1299 = vmul.f32 %v1251, %v1251
      %v1300 = vmul.f32 %v1252, %v1252
      %v1301 = vsub.f32 %v1285, %v1293
      %v1302 = vsub.f32 %v1286, %v1294
      %v1303 = vsub.f32 %v1287, %v1295
      %v1304 = vsub.f32 %v1288, %v1296
      %v1305 = vsub.f32 %v1289, %v1297
      %v1306 = vsub.f32 %v1290, %v1298
      %v1307 = vsub.f32 %v1291, %v1299
      %v1308 = vsub.f32 %v1292, %v1300
      %v1309 = vadd.f32 %v1301, 1e-05
      %v1310 = vadd.f32 %v1302, 1e-05
      %v1311 = vadd.f32 %v1303, 1e-05
      %v1312 = vadd.f32 %v1304, 1e-05
      %v1313 = vadd.f32 %v1305, 1e-05
      %v1314 = vadd.f32 %v1306, 1e-05
      %v1315 = vadd.f32 %v1307, 1e-05
      %v1316 = vadd.f32 %v1308, 1e-05
      %v1317 = vrsqrt.pop %v1309
      %v1318 = vmul.f32 %v1317, %v1309
      %v1319 = vmul.f32 %v1318, %v1317
      %v1320 = vmul.f32 0.5, %v1319
      %v1321 = vsub.f32 1.5, %v1320
      %v1322 = vmul.f32 %v1317, %v1321
      %vm1323 = vweird.f32 %v1309
      %vm1324 = vweird.f32 %v1317
      %vm1325 = vmor %vm1323, %vm1324
      %v1326 = vsel %vm1325, %v1317, %v1322
      %v1327 = vrsqrt.pop %v1310
      %v1328 = vmul.f32 %v1327, %v1310
      %v1329 = vmul.f32 %v1328, %v1327
      %v1330 = vmul.f32 0.5, %v1329
      %v1331 = vsub.f32 1.5, %v1330
      %v1332 = vmul.f32 %v1327, %v1331
      %vm1333 = vweird.f32 %v1310
      %vm1334 = vweird.f32 %v1327
      %vm1335 = vmor %vm1333, %vm1334
      %v1336 = vsel %vm1335, %v1327, %v1332
      %v1337 = vrsqrt.pop %v1311
      %v1338 = vmul.f32 %v1337, %v1311
      %v1339 = vmul.f32 %v1338, %v1337
      %v1340 = vmul.f32 0.5, %v1339
      %v1341 = vsub.f32 1.5, %v1340
      %v1342 = vmul.f32 %v1337, %v1341
      %vm1343 = vweird.f32 %v1311
      %vm1344 = vweird.f32 %v1337
      %vm1345 = vmor %vm1343, %vm1344
      %v1346 = vsel %vm1345, %v1337, %v1342
      %v1347 = vrsqrt.pop %v1312
      %v1348 = vmul.f32 %v1347, %v1312
      %v1349 = vmul.f32 %v1348, %v1347
      %v1350 = vmul.f32 0.5, %v1349
      %v1351 = vsub.f32 1.5, %v1350
      %v1352 = vmul.f32 %v1347, %v1351
      %vm1353 = vweird.f32 %v1312
      %vm1354 = vweird.f32 %v1347
      %vm1355 = vmor %vm1353, %vm1354
      %v1356 = vsel %vm1355, %v1347, %v1352
      %v1357 = vrsqrt.pop %v1313
      %v1358 = vmul.f32 %v1357, %v1313
      %v1359 = vmul.f32 %v1358, %v1357
      %v1360 = vmul.f32 0.5, %v1359
      %v1361 = vsub.f32 1.5, %v1360
      %v1362 = vmul.f32 %v1357, %v1361
      %vm1363 = vweird.f32 %v1313
      %vm1364 = vweird.f32 %v1357
      %vm1365 = vmor %vm1363, %vm1364
      %v1366 = vsel %vm1365, %v1357, %v1362
      %v1367 = vrsqrt.pop %v1314
      %v1368 = vmul.f32 %v1367, %v1314
      %v1369 = vmul.f32 %v1368, %v1367
      %v1370 = vmul.f32 0.5, %v1369
      %v1371 = vsub.f32 1.5, %v1370
      %v1372 = vmul.f32 %v1367, %v1371
      %vm1373 = vweird.f32 %v1314
      %vm1374 = vweird.f32 %v1367
      %vm1375 = vmor %vm1373, %vm1374
      %v1376 = vsel %vm1375, %v1367, %v1372
      %v1377 = vrsqrt.pop %v1315
      %v1378 = vmul.f32 %v1377, %v1315
      %v1379 = vmul.f32 %v1378, %v1377
      %v1380 = vmul.f32 0.5, %v1379
      %v1381 = vsub.f32 1.5, %v1380
      %v1382 = vmul.f32 %v1377, %v1381
      %vm1383 = vweird.f32 %v1315
      %vm1384 = vweird.f32 %v1377
      %vm1385 = vmor %vm1383, %vm1384
      %v1386 = vsel %vm1385, %v1377, %v1382
      %v1387 = vrsqrt.pop %v1316
      %v1388 = vmul.f32 %v1387, %v1316
      %v1389 = vmul.f32 %v1388, %v1387
      %v1390 = vmul.f32 0.5, %v1389
      %v1391 = vsub.f32 1.5, %v1390
      %v1392 = vmul.f32 %v1387, %v1391
      %vm1393 = vweird.f32 %v1316
      %vm1394 = vweird.f32 %v1387
      %vm1395 = vmor %vm1393, %vm1394
      %v1396 = vsel %vm1395, %v1387, %v1392
      %v1397 = vld [vmem:[%s6] sm:$0x1]
      %v1399 = vperm.slane %v1397, 0
      %v1401 = vmul.f32 %v1399, %v1326
      %v1402 = vmul.f32 %v1399, %v1336
      %v1403 = vmul.f32 %v1399, %v1346
      %v1404 = vmul.f32 %v1399, %v1356
      %v1405 = vmul.f32 %v1399, %v1366
      %v1406 = vmul.f32 %v1399, %v1376
      %v1407 = vmul.f32 %v1399, %v1386
      %v1408 = vmul.f32 %v1399, %v1396
      %v1409 = vld [vmem:[%s7] sm:$0x1]
      %v1410 = vmul.f32 %v1245, %v1401
      %v1411 = vmul.f32 %v1246, %v1402
      %v1412 = vmul.f32 %v1247, %v1403
      %v1413 = vmul.f32 %v1248, %v1404
      %v1414 = vmul.f32 %v1249, %v1405
      %v1415 = vmul.f32 %v1250, %v1406
      %v1416 = vmul.f32 %v1251, %v1407
      %v1417 = vmul.f32 %v1252, %v1408
      %v1419 = vperm.slane %v1409, 0
      %v1421 = vsub.f32 %v1419, %v1410
      %v1422 = vsub.f32 %v1419, %v1411
      %v1423 = vsub.f32 %v1419, %v1412
      %v1424 = vsub.f32 %v1419, %v1413
      %v1425 = vsub.f32 %v1419, %v1414
      %v1426 = vsub.f32 %v1419, %v1415
      %v1427 = vsub.f32 %v1419, %v1416
      %v1428 = vsub.f32 %v1419, %v1417
      %v1429 = vmul.f32 %v1202, %v1401
      %v1430 = vmul.f32 %v1204, %v1402
      %v1431 = vmul.f32 %v1207, %v1403
      %v1432 = vmul.f32 %v1209, %v1404
      %v1433 = vmul.f32 %v1212, %v1405
      %v1434 = vmul.f32 %v1214, %v1406
      %v1435 = vmul.f32 %v1217, %v1407
      %v1436 = vmul.f32 %v1219, %v1408
      %v1437 = vadd.f32 %v1429, %v1421
      %v1438 = vadd.f32 %v1430, %v1422
      %v1439 = vadd.f32 %v1431, %v1423
      %v1440 = vadd.f32 %v1432, %v1424
      %v1441 = vadd.f32 %v1433, %v1425
      %v1442 = vadd.f32 %v1434, %v1426
      %v1443 = vadd.f32 %v1435, %v1427
      %v1444 = vadd.f32 %v1436, %v1428
      %1445 = vst.msk [vmem:[%s443] sm:$0xff] %vm1092, %v1437
      %1446 = vst.msk [vmem:[%s443 + $0x8] sm:$0xff] %vm1092, %v1438
      %1447 = vst.msk [vmem:[%s443 + $0x10] sm:$0xff] %vm1092, %v1439
      %1448 = vst.msk [vmem:[%s443 + $0x18] sm:$0xff] %vm1092, %v1440
      %1449 = vst.msk [vmem:[%s443 + $0x20] sm:$0xff] %vm1092, %v1441
      %1450 = vst.msk [vmem:[%s443 + $0x28] sm:$0xff] %vm1092, %v1442
      %1451 = vst.msk [vmem:[%s443 + $0x30] sm:$0xff] %vm1092, %v1443
      %1452 = vst.msk [vmem:[%s443 + $0x38] sm:$0xff] %vm1092, %v1444
      %s1453 = smul.u32 8, %s24
      %p1454 = scmp.lt.s32.totalorder %s23, 1
      %s1455 = scalar_select %p1454, %s23, 1
      %p1456 = scmp.lt.s32.totalorder %s1453, 7
      %s1457 = scalar_select %p1456, %s1453, 7
      %s1458 = smul.addr %s1455, 8
      %s1459 = sadd.s32 %s1457, %s1458
      %s1460 = smul.addr %s1459, 8
      %s1461 = scalar_lea.vmem %s8, %s1460
      // Predicated region
      $region53: #{dass_downsample.1} parent=51 // pred_check
        %p1462 = pneg %p247
      $region54: #{dass_downsample.1} parent=51 // pred_check_branch
        %1464 = sbr.rel (%p1462) target = $region56
      $region55: #{dass_downsample.1} parent=51 // pred_region
        %s1465 = smul.u32 8, %s24
      $region56: #{dass_downsample.1} parent=51 // pred_fallthru
        _
    $region52: #{dass_downsample.1} parent=5 // pred_fallthru
      _
    %p1466 = scmp.le.s32.totalorder 2, %s14
    // Predicated region
    $region57: #{dass_downsample.1} parent=5 // pred_check
      %p1467 = pneg %p1466
    $region58: #{dass_downsample.1} parent=5 // pred_check_branch
      %1469 = sbr.rel (%p1467) target = $region60
    $region59: #{dass_downsample.1} parent=5 // pred_region
      %s1470 = ssub.s32 %s14, 2
      // Predicated region
      $region61: #{dass_downsample.1} parent=59 // pred_check
        %p1471 = pneg %p253
      $region62: #{dass_downsample.1} parent=59 // pred_check_branch
        %1473 = sbr.rel (%p1471) target = $region64
      $region63: #{dass_downsample.1} parent=59 // pred_region
        %s1474 = smul.u32 8, %s26
        %p1475 = scmp.lt.s32.totalorder %s25, 1
        %s1476 = scalar_select %p1475, %s25, 1
        %p1477 = scmp.lt.s32.totalorder %s1474, 7
        %s1478 = scalar_select %p1477, %s1474, 7
        %s1479 = smul.addr %s1476, 8
        %s1480 = sadd.s32 %s1478, %s1479
        %s1481 = smul.addr %s1480, 8
        %s1482 = scalar_lea.vmem %s8, %s1481
      $region64: #{dass_downsample.1} parent=59 // pred_fallthru
        _
    $region60: #{dass_downsample.1} parent=5 // pred_fallthru
      _
  $region6: #{dass_downsample.1} parent=0 // loop_footer
    %s18 = sadd.s32 1, %s14
  $region7: #{dass_downsample.1} parent=0 // loop_footer_branch
    %13 = sbr.rel target = $region3
  $region8: #{dass_downsample.1} parent=0 // loop_exit
    _

</llo_original>
